<compile_context>
chip_gen: v5e
topology: v5e:2x2
jax: 0.10.0
libtpu: 0.0.40
codegen_flags: <defaults>
</compile_context>

<pallas_src>
import functools
import math

import jax
import jax.numpy as jnp
from jax.experimental import pallas as pl
from jax.experimental.pallas import tpu as pltpu

HIDDEN_SIZE = 256
NUM_HEADS = 4
HEAD_DIM = HIDDEN_SIZE // NUM_HEADS  # 64
LN_EPS = 1e-6  # module explicitly uses eps=1e-06


def _layer_norm(x, gamma, beta):
    mu = jnp.mean(x, axis=-1, keepdims=True)
    xc = x - mu
    var = jnp.mean(xc * xc, axis=-1, keepdims=True)
    inv = jax.lax.rsqrt(var + LN_EPS)
    return xc * inv * gamma + beta


def cross_attention_kernel(
    q_in_ref, k_in_ref, v_in_ref,
    wq_ref, bq_ref, wk_ref, bk_ref, wv_ref, bv_ref,
    wout_ref, bout_ref,
    wfc_ref, bfc_ref, g1_ref, b1_ref,
    wfc1_ref, bfc1_ref, g2_ref, b2_ref,
    out_ref,
):
    BB, Lq, Dq = q_in_ref.shape
    _, Lk, Dk = k_in_ref.shape

    # Row-fuse the batch block: projections / FC / LN run on (BB*L, D) slabs.
    q_res = q_in_ref[...].reshape(BB * Lq, Dq)              # f32 residual path
    q_bf = q_res.astype(jnp.bfloat16)
    k_bf = k_in_ref[...].reshape(BB * Lk, Dk).astype(jnp.bfloat16)
    v_bf = v_in_ref[...].reshape(BB * Lk, Dk).astype(jnp.bfloat16)

    # Full-width (Din, 256) projections; in_proj and score scale pre-folded.
    qp = jnp.dot(q_bf, wq_ref[...], preferred_element_type=jnp.float32) + bq_ref[...]
    kp = jnp.dot(k_bf, wk_ref[...], preferred_element_type=jnp.float32) + bk_ref[...]
    vp = jnp.dot(v_bf, wv_ref[...], preferred_element_type=jnp.float32) + bv_ref[...]

    # Cast once per tensor; keep BB as a leading batch dim for the attention.
    qp = qp.reshape(BB, Lq, HIDDEN_SIZE).astype(jnp.bfloat16)
    kp = kp.reshape(BB, Lk, HIDDEN_SIZE).astype(jnp.bfloat16)
    vp = vp.reshape(BB, Lk, HIDDEN_SIZE).astype(jnp.bfloat16)

    ctx_heads = []
    for h in range(NUM_HEADS):  # static 64-lane head slices (XLU slot)
        lo = h * HEAD_DIM
        hi = lo + HEAD_DIM
        qh = qp[:, :, lo:hi]                                  # (BB, Lq, 64)
        kh = kp[:, :, lo:hi]                                  # (BB, Lk, 64)
        vh = vp[:, :, lo:hi]                                  # (BB, Lk, 64)

        s = jnp.einsum("bqd,bkd->bqk", qh, kh,
                       preferred_element_type=jnp.float32)    # scale pre-folded
        s = s - jnp.max(s, axis=-1, keepdims=True)
        p = jnp.exp(s)
        p = p * pl.reciprocal(jnp.sum(p, axis=-1, keepdims=True), approx=True)
        # TODO(synk): training-mode attention dropout (p=0.5) not implemented (eval semantics).
        ctx_heads.append(
            jnp.einsum("bqk,bkd->bqd", p.astype(jnp.bfloat16), vh,
                       preferred_element_type=jnp.float32))

    # Lane-concatenate heads -> (BB*Lq, 256), then one packed out-projection.
    ctx = jnp.concatenate(ctx_heads, axis=-1).reshape(BB * Lq, HIDDEN_SIZE)
    cross = jnp.dot(ctx.astype(jnp.bfloat16), wout_ref[...],
                    preferred_element_type=jnp.float32) + bout_ref[...]

    # Dq=32 tail is inherently lane-sparse; keep work here minimal.
    # skip = relu(fc(cross) + query_i); layer_norm
    skip = jnp.dot(cross.astype(jnp.bfloat16), wfc_ref[...],
                   preferred_element_type=jnp.float32) + bfc_ref[...]
    skip = skip + q_res
    skip = jnp.maximum(skip, 0.0)
    skip = _layer_norm(skip, g1_ref[...], b1_ref[...])

    # new = relu(fc_1(skip) + skip); layer_norm_1
    new = jnp.dot(skip.astype(jnp.bfloat16), wfc1_ref[...],
                  preferred_element_type=jnp.float32) + bfc1_ref[...]
    new = new + skip
    new = jnp.maximum(new, 0.0)
    out = _layer_norm(new, g2_ref[...], b2_ref[...])

    out_ref[...] = out.reshape(BB, Lq, Dq).astype(out_ref.dtype)


KERNEL_PARAM_ORDER = (
    "wq", "bq", "wk", "bk", "wv", "bv",
    "wout", "bout", "wfc", "bfc", "g1", "b1",
    "wfc1", "bfc1", "g2", "b2",
)


def fold_params(params):
    """Fold MHA in_proj into fc_q/k/v and the 1/sqrt(d) score scale into Q;
    cast matmul weights to bf16. Done once in the wrapper."""
    win, bin_ = params["win"], params["bin"]          # (256, 768), (1, 768)
    scale = 1.0 / math.sqrt(HEAD_DIM)

    def fold(w, b, col0, extra_scale=1.0):
        wcol = win[:, col0:col0 + HIDDEN_SIZE]        # (256, 256)
        bcol = bin_[:, col0:col0 + HIDDEN_SIZE]       # (1, 256)
        wf = (w @ wcol) * extra_scale                 # (Din, 256)
        bf = (b @ wcol + bcol) * extra_scale          # (1, 256)
        return wf.astype(jnp.bfloat16), bf.astype(jnp.float32)

    wq, bq = fold(params["wq"], params["bq"], 0, scale)
    wk, bk = fold(params["wk"], params["bk"], HIDDEN_SIZE)
    wv, bv = fold(params["wv"], params["bv"], 2 * HIDDEN_SIZE)

    return {
        "wq": wq, "bq": bq, "wk": wk, "bk": bk, "wv": wv, "bv": bv,
        "wout": params["wout"].astype(jnp.bfloat16), "bout": params["bout"],
        "wfc": params["wfc"].astype(jnp.bfloat16), "bfc": params["bfc"],
        "g1": params["g1"], "b1": params["b1"],
        "wfc1": params["wfc1"].astype(jnp.bfloat16), "bfc1": params["bfc1"],
        "g2": params["g2"], "b2": params["b2"],
    }


@functools.partial(jax.jit, static_argnames=("batch_block",))
def cross_attention_forward(query_i, key_i, value_i, kparams, batch_block=None):
    B, Lq, Dq = query_i.shape
    _, Lk, Dk = key_i.shape
    if batch_block is None:
        # Default: one grid step.  On single-TC v5e/v6e extra steps are pure
        # per-step overhead; only split 2-way ("parallel" -> v7x megacore) when
        # each half has enough rows to keep a 256-wide MXU busy.
        if B % 2 == 0 and (B // 2) * Lq >= 256:
            batch_block = B // 2
        else:
            batch_block = B
    assert B % batch_block == 0
    num_blocks = B // batch_block

    weights = [kparams[name] for name in KERNEL_PARAM_ORDER]

    in_specs = [
        pl.BlockSpec((batch_block, Lq, Dq), lambda b: (b, 0, 0)),
        pl.BlockSpec((batch_block, Lk, Dk), lambda b: (b, 0, 0)),
        pl.BlockSpec((batch_block, Lk, Dk), lambda b: (b, 0, 0)),
    ]
    for w in weights:
        in_specs.append(pl.BlockSpec(w.shape, lambda b, n=w.ndim: (0,) * n))

    return pl.pallas_call(
        cross_attention_kernel,
        out_shape=jax.ShapeDtypeStruct((B, Lq, Dq), jnp.float32),
        grid=(num_blocks,),
        in_specs=in_specs,
        out_specs=pl.BlockSpec((batch_block, Lq, Dq), lambda b: (b, 0, 0)),
        compiler_params=pltpu.CompilerParams(
            dimension_semantics=("parallel",),
            # Footprint is well under a MiB today; explicit cap keeps scaled-up
            # configs safe on v7x's 64 MiB VMEM.
            vmem_limit_bytes=32 * 1024 * 1024),
    )(query_i, key_i, value_i, *weights)


def init_params(key, hidden_dim_q, hidden_dim_k):
    """Deterministic synthetic parameters in the ORIGINAL module structure.

    Linear weights are stored pre-transposed as (in_dim, out_dim); biases and
    LayerNorm params as (1, dim). fold_params() produces the kernel-side set.
    """
    ks = jax.random.split(key, 16)
    H = HIDDEN_SIZE

    def lin(k, din, dout, scale=0.05):
        return scale * jax.random.normal(k, (din, dout), jnp.float32)

    params = {
        # fc_q / fc_k / fc_v
        "wq": lin(ks[0], hidden_dim_q, H),
        "bq": 0.01 * jax.random.normal(ks[1], (1, H), jnp.float32),
        "wk": lin(ks[2], hidden_dim_k, H),
        "bk": 0.01 * jax.random.normal(ks[3], (1, H), jnp.float32),
        "wv": lin(ks[4], hidden_dim_k, H),
        "bv": 0.01 * jax.random.normal(ks[5], (1, H), jnp.float32),
        # MultiheadAttention in_proj (packed q/k/v) and out_proj
        "win": lin(ks[6], H, 3 * H),
        "bin": 0.01 * jax.random.normal(ks[7], (1, 3 * H), jnp.float32),
        "wout": lin(ks[8], H, H),
        "bout": 0.01 * jax.random.normal(ks[9], (1, H), jnp.float32),
        # fc, layer_norm, fc_1, layer_norm_1
        "wfc": lin(ks[10], H, hidden_dim_q),
        "bfc": 0.01 * jax.random.normal(ks[11], (1, hidden_dim_q), jnp.float32),
        "g1": jnp.ones((1, hidden_dim_q), jnp.float32),
        "b1": jnp.zeros((1, hidden_dim_q), jnp.float32),
        "wfc1": lin(ks[12], hidden_dim_q, hidden_dim_q),
        "bfc1": 0.01 * jax.random.normal(ks[13], (1, hidden_dim_q), jnp.float32),
        "g2": jnp.ones((1, hidden_dim_q), jnp.float32),
        "b2": jnp.zeros((1, hidden_dim_q), jnp.float32),
    }
    return params


def reference_forward(query_i, key_i, value_i, p):
    """Pure-JAX f32 reference with the original (unfolded) parameters."""
    H, D = NUM_HEADS, HEAD_DIM
    q = query_i @ p["wq"] + p["bq"]
    k = key_i @ p["wk"] + p["bk"]
    v = value_i @ p["wv"] + p["bv"]

    win, binp = p["win"], p["bin"]
    q2 = q @ win[:, :HIDDEN_SIZE] + binp[:, :HIDDEN_SIZE]
    k2 = k @ win[:, HIDDEN_SIZE:2 * HIDDEN_SIZE] + binp[:, HIDDEN_SIZE:2 * HIDDEN_SIZE]
    v2 = v @ win[:, 2 * HIDDEN_SIZE:] + binp[:, 2 * HIDDEN_SIZE:]

    B, Lq, _ = q2.shape
    Lk = k2.shape[1]
    q2 = q2.reshape(B, Lq, H, D).transpose(0, 2, 1, 3)
    k2 = k2.reshape(B, Lk, H, D).transpose(0, 2, 1, 3)
    v2 = v2.reshape(B, Lk, H, D).transpose(0, 2, 1, 3)
    s = jnp.einsum("bhqd,bhkd->bhqk", q2, k2) / math.sqrt(D)
    pr = jax.nn.softmax(s, axis=-1)
    ctx = jnp.einsum("bhqk,bhkd->bhqd", pr, v2)
    ctx = ctx.transpose(0, 2, 1, 3).reshape(B, Lq, H * D)
    cross = ctx @ p["wout"] + p["bout"]

    skip = cross @ p["wfc"] + p["bfc"] + query_i
    skip = jax.nn.relu(skip)
    skip = _layer_norm(skip, p["g1"], p["b1"])
    new = skip @ p["wfc1"] + p["bfc1"] + skip
    new = jax.nn.relu(new)
    return _layer_norm(new, p["g2"], p["b2"])


if __name__ == "__main__":
    B, Lq, Lk = 2, 8, 8
    hidden_dim_q, hidden_dim_k = 32, 48

    key = jax.random.PRNGKey(0)
    k_in, k_param = jax.random.split(key)
    kq, kk, kv = jax.random.split(k_in, 3)

    query_i = jax.random.normal(kq, (B, Lq, hidden_dim_q), jnp.float32)
    key_i = jax.random.normal(kk, (B, Lk, hidden_dim_k), jnp.float32)
    value_i = jax.random.normal(kv, (B, Lk, hidden_dim_k), jnp.float32)

    params = init_params(k_param, hidden_dim_q, hidden_dim_k)
    kparams = fold_params(params)

    out = cross_attention_forward(query_i, key_i, value_i, kparams)
    jax.block_until_ready(out)

    assert out.shape == (B, Lq, hidden_dim_q)
    assert jnp.all(jnp.isfinite(out))

    # Loose tolerance: kernel uses bf16 weights/activations with f32 accumulation.
    ref = reference_forward(query_i, key_i, value_i, params)
    max_err = float(jnp.max(jnp.abs(out - ref)))
    assert jnp.allclose(out, ref, atol=0.1, rtol=0.1), f"max_err={max_err}"

    print("KERNEL_OK")
</pallas_src>

<mosaic_0001>
module attributes {stable_mosaic.version = 11 : i64} {
  func.func @cross_attention_kernel(%arg0: i32, %arg1: memref<2x8x32xf32, #tpu.memory_space<vmem>>, %arg2: memref<2x8x48xf32, #tpu.memory_space<vmem>>, %arg3: memref<2x8x48xf32, #tpu.memory_space<vmem>>, %arg4: memref<32x256xbf16, #tpu.memory_space<vmem>>, %arg5: memref<1x256xf32, #tpu.memory_space<vmem>>, %arg6: memref<48x256xbf16, #tpu.memory_space<vmem>>, %arg7: memref<1x256xf32, #tpu.memory_space<vmem>>, %arg8: memref<48x256xbf16, #tpu.memory_space<vmem>>, %arg9: memref<1x256xf32, #tpu.memory_space<vmem>>, %arg10: memref<256x256xbf16, #tpu.memory_space<vmem>>, %arg11: memref<1x256xf32, #tpu.memory_space<vmem>>, %arg12: memref<256x32xbf16, #tpu.memory_space<vmem>>, %arg13: memref<1x32xf32, #tpu.memory_space<vmem>>, %arg14: memref<1x32xf32, #tpu.memory_space<vmem>>, %arg15: memref<1x32xf32, #tpu.memory_space<vmem>>, %arg16: memref<32x32xbf16, #tpu.memory_space<vmem>>, %arg17: memref<1x32xf32, #tpu.memory_space<vmem>>, %arg18: memref<1x32xf32, #tpu.memory_space<vmem>>, %arg19: memref<1x32xf32, #tpu.memory_space<vmem>>, %arg20: memref<2x8x32xf32, #tpu.memory_space<vmem>>) attributes {dimension_semantics = [#tpu.dimension_semantics<parallel>], iteration_bounds = array<i64: 1>, scalar_prefetch = 0 : i64, scratch_operands = 0 : i64, tpu.core_type = #tpu.core_type<tc>, window_params = [{transform_indices = @transform_0, window_bounds = array<i64: 2, 8, 32>}, {transform_indices = @transform_1, window_bounds = array<i64: 2, 8, 48>}, {transform_indices = @transform_2, window_bounds = array<i64: 2, 8, 48>}, {pipeline_mode = #tpu.pipeline_mode<synchronous>, transform_indices = @transform_3, window_bounds = array<i64: 32, 256>}, {pipeline_mode = #tpu.pipeline_mode<synchronous>, transform_indices = @transform_4, window_bounds = array<i64: 1, 256>}, {pipeline_mode = #tpu.pipeline_mode<synchronous>, transform_indices = @transform_5, window_bounds = array<i64: 48, 256>}, {pipeline_mode = #tpu.pipeline_mode<synchronous>, transform_indices = @transform_6, window_bounds = array<i64: 1, 256>}, {pipeline_mode = #tpu.pipeline_mode<synchronous>, transform_indices = @transform_7, window_bounds = array<i64: 48, 256>}, {pipeline_mode = #tpu.pipeline_mode<synchronous>, transform_indices = @transform_8, window_bounds = array<i64: 1, 256>}, {pipeline_mode = #tpu.pipeline_mode<synchronous>, transform_indices = @transform_9, window_bounds = array<i64: 256, 256>}, {pipeline_mode = #tpu.pipeline_mode<synchronous>, transform_indices = @transform_10, window_bounds = array<i64: 1, 256>}, {pipeline_mode = #tpu.pipeline_mode<synchronous>, transform_indices = @transform_11, window_bounds = array<i64: 256, 32>}, {pipeline_mode = #tpu.pipeline_mode<synchronous>, transform_indices = @transform_12, window_bounds = array<i64: 1, 32>}, {pipeline_mode = #tpu.pipeline_mode<synchronous>, transform_indices = @transform_13, window_bounds = array<i64: 1, 32>}, {pipeline_mode = #tpu.pipeline_mode<synchronous>, transform_indices = @transform_14, window_bounds = array<i64: 1, 32>}, {pipeline_mode = #tpu.pipeline_mode<synchronous>, transform_indices = @transform_15, window_bounds = array<i64: 32, 32>}, {pipeline_mode = #tpu.pipeline_mode<synchronous>, transform_indices = @transform_16, window_bounds = array<i64: 1, 32>}, {pipeline_mode = #tpu.pipeline_mode<synchronous>, transform_indices = @transform_17, window_bounds = array<i64: 1, 32>}, {pipeline_mode = #tpu.pipeline_mode<synchronous>, transform_indices = @transform_18, window_bounds = array<i64: 1, 32>}, {transform_indices = @transform_19, window_bounds = array<i64: 2, 8, 32>}]} {
    %c0 = arith.constant 0 : index
    %c0_0 = arith.constant 0 : index
    %c0_1 = arith.constant 0 : index
    %0 = vector.load %arg1[%c0, %c0_0, %c0_1] : memref<2x8x32xf32, #tpu.memory_space<vmem>>, vector<2x8x32xf32>
    %1 = vector.shape_cast %0 : vector<2x8x32xf32> to vector<16x32xf32>
    %2 = arith.truncf %1 : vector<16x32xf32> to vector<16x32xbf16>
    %c0_2 = arith.constant 0 : index
    %c0_3 = arith.constant 0 : index
    %c0_4 = arith.constant 0 : index
    %3 = vector.load %arg2[%c0_2, %c0_3, %c0_4] : memref<2x8x48xf32, #tpu.memory_space<vmem>>, vector<2x8x48xf32>
    %4 = vector.shape_cast %3 : vector<2x8x48xf32> to vector<16x48xf32>
    %5 = arith.truncf %4 : vector<16x48xf32> to vector<16x48xbf16>
    %c0_5 = arith.constant 0 : index
    %c0_6 = arith.constant 0 : index
    %c0_7 = arith.constant 0 : index
    %6 = vector.load %arg3[%c0_5, %c0_6, %c0_7] : memref<2x8x48xf32, #tpu.memory_space<vmem>>, vector<2x8x48xf32>
    %7 = vector.shape_cast %6 : vector<2x8x48xf32> to vector<16x48xf32>
    %8 = arith.truncf %7 : vector<16x48xf32> to vector<16x48xbf16>
    %c0_8 = arith.constant 0 : index
    %c0_9 = arith.constant 0 : index
    %9 = vector.load %arg4[%c0_8, %c0_9] : memref<32x256xbf16, #tpu.memory_space<vmem>>, vector<32x256xbf16>
    %cst = arith.constant dense<0.000000e+00> : vector<16x256xf32>
    %10 = tpu.matmul %2, %9, %cst {dimension_numbers = #tpu.dot_dimension_numbers<[1], [0], [0], [1], [0, 0, 1, 1], [], []>} : vector<16x32xbf16>, vector<32x256xbf16>, vector<16x256xf32> -> vector<16x256xf32>
    %c0_10 = arith.constant 0 : index
    %c0_11 = arith.constant 0 : index
    %11 = vector.load %arg5[%c0_10, %c0_11] : memref<1x256xf32, #tpu.memory_space<vmem>>, vector<1x256xf32>
    %12 = vector.broadcast %11 : vector<1x256xf32> to vector<16x256xf32>
    %13 = arith.addf %10, %12 : vector<16x256xf32>
    %c0_12 = arith.constant 0 : index
    %c0_13 = arith.constant 0 : index
    %14 = vector.load %arg6[%c0_12, %c0_13] : memref<48x256xbf16, #tpu.memory_space<vmem>>, vector<48x256xbf16>
    %cst_14 = arith.constant dense<0.000000e+00> : vector<16x256xf32>
    %15 = tpu.matmul %5, %14, %cst_14 {dimension_numbers = #tpu.dot_dimension_numbers<[1], [0], [0], [1], [0, 0, 1, 1], [], []>} : vector<16x48xbf16>, vector<48x256xbf16>, vector<16x256xf32> -> vector<16x256xf32>
    %c0_15 = arith.constant 0 : index
    %c0_16 = arith.constant 0 : index
    %16 = vector.load %arg7[%c0_15, %c0_16] : memref<1x256xf32, #tpu.memory_space<vmem>>, vector<1x256xf32>
    %17 = vector.broadcast %16 : vector<1x256xf32> to vector<16x256xf32>
    %18 = arith.addf %15, %17 : vector<16x256xf32>
    %c0_17 = arith.constant 0 : index
    %c0_18 = arith.constant 0 : index
    %19 = vector.load %arg8[%c0_17, %c0_18] : memref<48x256xbf16, #tpu.memory_space<vmem>>, vector<48x256xbf16>
    %cst_19 = arith.constant dense<0.000000e+00> : vector<16x256xf32>
    %20 = tpu.matmul %8, %19, %cst_19 {dimension_numbers = #tpu.dot_dimension_numbers<[1], [0], [0], [1], [0, 0, 1, 1], [], []>} : vector<16x48xbf16>, vector<48x256xbf16>, vector<16x256xf32> -> vector<16x256xf32>
    %c0_20 = arith.constant 0 : index
    %c0_21 = arith.constant 0 : index
    %21 = vector.load %arg9[%c0_20, %c0_21] : memref<1x256xf32, #tpu.memory_space<vmem>>, vector<1x256xf32>
    %22 = vector.broadcast %21 : vector<1x256xf32> to vector<16x256xf32>
    %23 = arith.addf %20, %22 : vector<16x256xf32>
    %24 = vector.shape_cast %13 : vector<16x256xf32> to vector<2x8x256xf32>
    %25 = arith.truncf %24 : vector<2x8x256xf32> to vector<2x8x256xbf16>
    %26 = vector.shape_cast %18 : vector<16x256xf32> to vector<2x8x256xf32>
    %27 = arith.truncf %26 : vector<2x8x256xf32> to vector<2x8x256xbf16>
    %28 = vector.shape_cast %23 : vector<16x256xf32> to vector<2x8x256xf32>
    %29 = arith.truncf %28 : vector<2x8x256xf32> to vector<2x8x256xbf16>
    %30 = vector.extract_strided_slice %25 {offsets = [0, 0, 0], sizes = [2, 8, 64], strides = [1, 1, 1]} : vector<2x8x256xbf16> to vector<2x8x64xbf16>
    %31 = vector.extract_strided_slice %27 {offsets = [0, 0, 0], sizes = [2, 8, 64], strides = [1, 1, 1]} : vector<2x8x256xbf16> to vector<2x8x64xbf16>
    %32 = vector.extract_strided_slice %29 {offsets = [0, 0, 0], sizes = [2, 8, 64], strides = [1, 1, 1]} : vector<2x8x256xbf16> to vector<2x8x64xbf16>
    "tpu.trace_start"() <{level = 10 : i32, message = "bqd,bkd->bqk"}> : () -> ()
    %cst_22 = arith.constant dense<0.000000e+00> : vector<2x8x8xf32>
    %33 = tpu.matmul %30, %31, %cst_22 {dimension_numbers = #tpu.dot_dimension_numbers<[2], [2], [1], [1], [0, 0, 0, 1, 1, 1], [0], [0]>} : vector<2x8x64xbf16>, vector<2x8x64xbf16>, vector<2x8x8xf32> -> vector<2x8x8xf32>
    "tpu.trace_stop"() : () -> ()
    %cst_23 = arith.constant dense<0xFF800000> : vector<2x8xf32>
    %34 = vector.multi_reduction <maximumf>, %33, %cst_23 [2] : vector<2x8x8xf32> to vector<2x8xf32>
    %35 = vector.shape_cast %34 : vector<2x8xf32> to vector<2x8x1xf32>
    %36 = vector.broadcast %35 : vector<2x8x1xf32> to vector<2x8x8xf32>
    %37 = arith.subf %33, %36 : vector<2x8x8xf32>
    %38 = math.exp %37 : vector<2x8x8xf32>
    %cst_24 = arith.constant dense<0.000000e+00> : vector<2x8xf32>
    %39 = vector.multi_reduction <add>, %38, %cst_24 [2] : vector<2x8x8xf32> to vector<2x8xf32>
    %40 = vector.shape_cast %39 : vector<2x8xf32> to vector<2x8x1xf32>
    %41 = tpu.reciprocal %40 {approx = true} : vector<2x8x1xf32> -> vector<2x8x1xf32>
    %42 = vector.broadcast %41 : vector<2x8x1xf32> to vector<2x8x8xf32>
    %43 = arith.mulf %38, %42 : vector<2x8x8xf32>
    %44 = arith.truncf %43 : vector<2x8x8xf32> to vector<2x8x8xbf16>
    "tpu.trace_start"() <{level = 10 : i32, message = "bqk,bkd->bqd"}> : () -> ()
    %cst_25 = arith.constant dense<0.000000e+00> : vector<2x8x64xf32>
    %45 = tpu.matmul %44, %32, %cst_25 {dimension_numbers = #tpu.dot_dimension_numbers<[2], [1], [1], [2], [0, 0, 0, 1, 1, 2], [0], [0]>} : vector<2x8x8xbf16>, vector<2x8x64xbf16>, vector<2x8x64xf32> -> vector<2x8x64xf32>
    "tpu.trace_stop"() : () -> ()
    %46 = vector.extract_strided_slice %25 {offsets = [0, 0, 64], sizes = [2, 8, 64], strides = [1, 1, 1]} : vector<2x8x256xbf16> to vector<2x8x64xbf16>
    %47 = vector.extract_strided_slice %27 {offsets = [0, 0, 64], sizes = [2, 8, 64], strides = [1, 1, 1]} : vector<2x8x256xbf16> to vector<2x8x64xbf16>
    %48 = vector.extract_strided_slice %29 {offsets = [0, 0, 64], sizes = [2, 8, 64], strides = [1, 1, 1]} : vector<2x8x256xbf16> to vector<2x8x64xbf16>
    "tpu.trace_start"() <{level = 10 : i32, message = "bqd,bkd->bqk"}> : () -> ()
    %cst_26 = arith.constant dense<0.000000e+00> : vector<2x8x8xf32>
    %49 = tpu.matmul %46, %47, %cst_26 {dimension_numbers = #tpu.dot_dimension_numbers<[2], [2], [1], [1], [0, 0, 0, 1, 1, 1], [0], [0]>} : vector<2x8x64xbf16>, vector<2x8x64xbf16>, vector<2x8x8xf32> -> vector<2x8x8xf32>
    "tpu.trace_stop"() : () -> ()
    %cst_27 = arith.constant dense<0xFF800000> : vector<2x8xf32>
    %50 = vector.multi_reduction <maximumf>, %49, %cst_27 [2] : vector<2x8x8xf32> to vector<2x8xf32>
    %51 = vector.shape_cast %50 : vector<2x8xf32> to vector<2x8x1xf32>
    %52 = vector.broadcast %51 : vector<2x8x1xf32> to vector<2x8x8xf32>
    %53 = arith.subf %49, %52 : vector<2x8x8xf32>
    %54 = math.exp %53 : vector<2x8x8xf32>
    %cst_28 = arith.constant dense<0.000000e+00> : vector<2x8xf32>
    %55 = vector.multi_reduction <add>, %54, %cst_28 [2] : vector<2x8x8xf32> to vector<2x8xf32>
    %56 = vector.shape_cast %55 : vector<2x8xf32> to vector<2x8x1xf32>
    %57 = tpu.reciprocal %56 {approx = true} : vector<2x8x1xf32> -> vector<2x8x1xf32>
    %58 = vector.broadcast %57 : vector<2x8x1xf32> to vector<2x8x8xf32>
    %59 = arith.mulf %54, %58 : vector<2x8x8xf32>
    %60 = arith.truncf %59 : vector<2x8x8xf32> to vector<2x8x8xbf16>
    "tpu.trace_start"() <{level = 10 : i32, message = "bqk,bkd->bqd"}> : () -> ()
    %cst_29 = arith.constant dense<0.000000e+00> : vector<2x8x64xf32>
    %61 = tpu.matmul %60, %48, %cst_29 {dimension_numbers = #tpu.dot_dimension_numbers<[2], [1], [1], [2], [0, 0, 0, 1, 1, 2], [0], [0]>} : vector<2x8x8xbf16>, vector<2x8x64xbf16>, vector<2x8x64xf32> -> vector<2x8x64xf32>
    "tpu.trace_stop"() : () -> ()
    %62 = vector.extract_strided_slice %25 {offsets = [0, 0, 128], sizes = [2, 8, 64], strides = [1, 1, 1]} : vector<2x8x256xbf16> to vector<2x8x64xbf16>
    %63 = vector.extract_strided_slice %27 {offsets = [0, 0, 128], sizes = [2, 8, 64], strides = [1, 1, 1]} : vector<2x8x256xbf16> to vector<2x8x64xbf16>
    %64 = vector.extract_strided_slice %29 {offsets = [0, 0, 128], sizes = [2, 8, 64], strides = [1, 1, 1]} : vector<2x8x256xbf16> to vector<2x8x64xbf16>
    "tpu.trace_start"() <{level = 10 : i32, message = "bqd,bkd->bqk"}> : () -> ()
    %cst_30 = arith.constant dense<0.000000e+00> : vector<2x8x8xf32>
    %65 = tpu.matmul %62, %63, %cst_30 {dimension_numbers = #tpu.dot_dimension_numbers<[2], [2], [1], [1], [0, 0, 0, 1, 1, 1], [0], [0]>} : vector<2x8x64xbf16>, vector<2x8x64xbf16>, vector<2x8x8xf32> -> vector<2x8x8xf32>
    "tpu.trace_stop"() : () -> ()
    %cst_31 = arith.constant dense<0xFF800000> : vector<2x8xf32>
    %66 = vector.multi_reduction <maximumf>, %65, %cst_31 [2] : vector<2x8x8xf32> to vector<2x8xf32>
    %67 = vector.shape_cast %66 : vector<2x8xf32> to vector<2x8x1xf32>
    %68 = vector.broadcast %67 : vector<2x8x1xf32> to vector<2x8x8xf32>
    %69 = arith.subf %65, %68 : vector<2x8x8xf32>
    %70 = math.exp %69 : vector<2x8x8xf32>
    %cst_32 = arith.constant dense<0.000000e+00> : vector<2x8xf32>
    %71 = vector.multi_reduction <add>, %70, %cst_32 [2] : vector<2x8x8xf32> to vector<2x8xf32>
    %72 = vector.shape_cast %71 : vector<2x8xf32> to vector<2x8x1xf32>
    %73 = tpu.reciprocal %72 {approx = true} : vector<2x8x1xf32> -> vector<2x8x1xf32>
    %74 = vector.broadcast %73 : vector<2x8x1xf32> to vector<2x8x8xf32>
    %75 = arith.mulf %70, %74 : vector<2x8x8xf32>
    %76 = arith.truncf %75 : vector<2x8x8xf32> to vector<2x8x8xbf16>
    "tpu.trace_start"() <{level = 10 : i32, message = "bqk,bkd->bqd"}> : () -> ()
    %cst_33 = arith.constant dense<0.000000e+00> : vector<2x8x64xf32>
    %77 = tpu.matmul %76, %64, %cst_33 {dimension_numbers = #tpu.dot_dimension_numbers<[2], [1], [1], [2], [0, 0, 0, 1, 1, 2], [0], [0]>} : vector<2x8x8xbf16>, vector<2x8x64xbf16>, vector<2x8x64xf32> -> vector<2x8x64xf32>
    "tpu.trace_stop"() : () -> ()
    %78 = vector.extract_strided_slice %25 {offsets = [0, 0, 192], sizes = [2, 8, 64], strides = [1, 1, 1]} : vector<2x8x256xbf16> to vector<2x8x64xbf16>
    %79 = vector.extract_strided_slice %27 {offsets = [0, 0, 192], sizes = [2, 8, 64], strides = [1, 1, 1]} : vector<2x8x256xbf16> to vector<2x8x64xbf16>
    %80 = vector.extract_strided_slice %29 {offsets = [0, 0, 192], sizes = [2, 8, 64], strides = [1, 1, 1]} : vector<2x8x256xbf16> to vector<2x8x64xbf16>
    "tpu.trace_start"() <{level = 10 : i32, message = "bqd,bkd->bqk"}> : () -> ()
    %cst_34 = arith.constant dense<0.000000e+00> : vector<2x8x8xf32>
    %81 = tpu.matmul %78, %79, %cst_34 {dimension_numbers = #tpu.dot_dimension_numbers<[2], [2], [1], [1], [0, 0, 0, 1, 1, 1], [0], [0]>} : vector<2x8x64xbf16>, vector<2x8x64xbf16>, vector<2x8x8xf32> -> vector<2x8x8xf32>
    "tpu.trace_stop"() : () -> ()
    %cst_35 = arith.constant dense<0xFF800000> : vector<2x8xf32>
    %82 = vector.multi_reduction <maximumf>, %81, %cst_35 [2] : vector<2x8x8xf32> to vector<2x8xf32>
    %83 = vector.shape_cast %82 : vector<2x8xf32> to vector<2x8x1xf32>
    %84 = vector.broadcast %83 : vector<2x8x1xf32> to vector<2x8x8xf32>
    %85 = arith.subf %81, %84 : vector<2x8x8xf32>
    %86 = math.exp %85 : vector<2x8x8xf32>
    %cst_36 = arith.constant dense<0.000000e+00> : vector<2x8xf32>
    %87 = vector.multi_reduction <add>, %86, %cst_36 [2] : vector<2x8x8xf32> to vector<2x8xf32>
    %88 = vector.shape_cast %87 : vector<2x8xf32> to vector<2x8x1xf32>
    %89 = tpu.reciprocal %88 {approx = true} : vector<2x8x1xf32> -> vector<2x8x1xf32>
    %90 = vector.broadcast %89 : vector<2x8x1xf32> to vector<2x8x8xf32>
    %91 = arith.mulf %86, %90 : vector<2x8x8xf32>
    %92 = arith.truncf %91 : vector<2x8x8xf32> to vector<2x8x8xbf16>
    "tpu.trace_start"() <{level = 10 : i32, message = "bqk,bkd->bqd"}> : () -> ()
    %cst_37 = arith.constant dense<0.000000e+00> : vector<2x8x64xf32>
    %93 = tpu.matmul %92, %80, %cst_37 {dimension_numbers = #tpu.dot_dimension_numbers<[2], [1], [1], [2], [0, 0, 0, 1, 1, 2], [0], [0]>} : vector<2x8x8xbf16>, vector<2x8x64xbf16>, vector<2x8x64xf32> -> vector<2x8x64xf32>
    "tpu.trace_stop"() : () -> ()
    %94 = tpu.concatenate %45, %61, %77, %93 in 2 : vector<2x8x64xf32>, vector<2x8x64xf32>, vector<2x8x64xf32>, vector<2x8x64xf32> -> vector<2x8x256xf32>
    %95 = vector.shape_cast %94 : vector<2x8x256xf32> to vector<16x256xf32>
    %96 = arith.truncf %95 : vector<16x256xf32> to vector<16x256xbf16>
    %c0_38 = arith.constant 0 : index
    %c0_39 = arith.constant 0 : index
    %97 = vector.load %arg10[%c0_38, %c0_39] : memref<256x256xbf16, #tpu.memory_space<vmem>>, vector<256x256xbf16>
    %cst_40 = arith.constant dense<0.000000e+00> : vector<16x256xf32>
    %98 = tpu.matmul %96, %97, %cst_40 {dimension_numbers = #tpu.dot_dimension_numbers<[1], [0], [0], [1], [0, 0, 1, 1], [], []>} : vector<16x256xbf16>, vector<256x256xbf16>, vector<16x256xf32> -> vector<16x256xf32>
    %c0_41 = arith.constant 0 : index
    %c0_42 = arith.constant 0 : index
    %99 = vector.load %arg11[%c0_41, %c0_42] : memref<1x256xf32, #tpu.memory_space<vmem>>, vector<1x256xf32>
    %100 = vector.broadcast %99 : vector<1x256xf32> to vector<16x256xf32>
    %101 = arith.addf %98, %100 : vector<16x256xf32>
    %102 = arith.truncf %101 : vector<16x256xf32> to vector<16x256xbf16>
    %c0_43 = arith.constant 0 : index
    %c0_44 = arith.constant 0 : index
    %103 = vector.load %arg12[%c0_43, %c0_44] : memref<256x32xbf16, #tpu.memory_space<vmem>>, vector<256x32xbf16>
    %cst_45 = arith.constant dense<0.000000e+00> : vector<16x32xf32>
    %104 = tpu.matmul %102, %103, %cst_45 {dimension_numbers = #tpu.dot_dimension_numbers<[1], [0], [0], [1], [0, 0, 1, 1], [], []>} : vector<16x256xbf16>, vector<256x32xbf16>, vector<16x32xf32> -> vector<16x32xf32>
    %c0_46 = arith.constant 0 : index
    %c0_47 = arith.constant 0 : index
    %105 = vector.load %arg13[%c0_46, %c0_47] : memref<1x32xf32, #tpu.memory_space<vmem>>, vector<1x32xf32>
    %106 = vector.broadcast %105 : vector<1x32xf32> to vector<16x32xf32>
    %107 = arith.addf %104, %106 : vector<16x32xf32>
    %108 = arith.addf %107, %1 : vector<16x32xf32>
    %cst_48 = arith.constant 0.000000e+00 : f32
    %109 = vector.broadcast %cst_48 : f32 to vector<16x32xf32>
    %110 = arith.maximumf %108, %109 : vector<16x32xf32>
    %c0_49 = arith.constant 0 : index
    %c0_50 = arith.constant 0 : index
    %111 = vector.load %arg14[%c0_49, %c0_50] : memref<1x32xf32, #tpu.memory_space<vmem>>, vector<1x32xf32>
    %c0_51 = arith.constant 0 : index
    %c0_52 = arith.constant 0 : index
    %112 = vector.load %arg15[%c0_51, %c0_52] : memref<1x32xf32, #tpu.memory_space<vmem>>, vector<1x32xf32>
    %cst_53 = arith.constant dense<0.000000e+00> : vector<16xf32>
    %113 = vector.multi_reduction <add>, %110, %cst_53 [1] : vector<16x32xf32> to vector<16xf32>
    %114 = vector.shape_cast %113 : vector<16xf32> to vector<16x1xf32>
    %cst_54 = arith.constant 3.200000e+01 : f32
    %115 = vector.broadcast %cst_54 : f32 to vector<16x1xf32>
    %116 = arith.divf %114, %115 : vector<16x1xf32>
    %117 = vector.broadcast %116 : vector<16x1xf32> to vector<16x32xf32>
    %118 = arith.subf %110, %117 : vector<16x32xf32>
    %119 = arith.mulf %118, %118 : vector<16x32xf32>
    %cst_55 = arith.constant dense<0.000000e+00> : vector<16xf32>
    %120 = vector.multi_reduction <add>, %119, %cst_55 [1] : vector<16x32xf32> to vector<16xf32>
    %121 = vector.shape_cast %120 : vector<16xf32> to vector<16x1xf32>
    %cst_56 = arith.constant 3.200000e+01 : f32
    %122 = vector.broadcast %cst_56 : f32 to vector<16x1xf32>
    %123 = arith.divf %121, %122 : vector<16x1xf32>
    %cst_57 = arith.constant 9.99999997E-7 : f32
    %124 = vector.broadcast %cst_57 : f32 to vector<16x1xf32>
    %125 = arith.addf %123, %124 : vector<16x1xf32>
    %126 = math.rsqrt %125 : vector<16x1xf32>
    %127 = vector.broadcast %126 : vector<16x1xf32> to vector<16x32xf32>
    %128 = arith.mulf %118, %127 : vector<16x32xf32>
    %129 = vector.broadcast %111 : vector<1x32xf32> to vector<16x32xf32>
    %130 = arith.mulf %128, %129 : vector<16x32xf32>
    %131 = vector.broadcast %112 : vector<1x32xf32> to vector<16x32xf32>
    %132 = arith.addf %130, %131 : vector<16x32xf32>
    %133 = arith.truncf %132 : vector<16x32xf32> to vector<16x32xbf16>
    %c0_58 = arith.constant 0 : index
    %c0_59 = arith.constant 0 : index
    %134 = vector.load %arg16[%c0_58, %c0_59] : memref<32x32xbf16, #tpu.memory_space<vmem>>, vector<32x32xbf16>
    %cst_60 = arith.constant dense<0.000000e+00> : vector<16x32xf32>
    %135 = tpu.matmul %133, %134, %cst_60 {dimension_numbers = #tpu.dot_dimension_numbers<[1], [0], [0], [1], [0, 0, 1, 1], [], []>} : vector<16x32xbf16>, vector<32x32xbf16>, vector<16x32xf32> -> vector<16x32xf32>
    %c0_61 = arith.constant 0 : index
    %c0_62 = arith.constant 0 : index
    %136 = vector.load %arg17[%c0_61, %c0_62] : memref<1x32xf32, #tpu.memory_space<vmem>>, vector<1x32xf32>
    %137 = vector.broadcast %136 : vector<1x32xf32> to vector<16x32xf32>
    %138 = arith.addf %135, %137 : vector<16x32xf32>
    %139 = arith.addf %138, %132 : vector<16x32xf32>
    %cst_63 = arith.constant 0.000000e+00 : f32
    %140 = vector.broadcast %cst_63 : f32 to vector<16x32xf32>
    %141 = arith.maximumf %139, %140 : vector<16x32xf32>
    %c0_64 = arith.constant 0 : index
    %c0_65 = arith.constant 0 : index
    %142 = vector.load %arg18[%c0_64, %c0_65] : memref<1x32xf32, #tpu.memory_space<vmem>>, vector<1x32xf32>
    %c0_66 = arith.constant 0 : index
    %c0_67 = arith.constant 0 : index
    %143 = vector.load %arg19[%c0_66, %c0_67] : memref<1x32xf32, #tpu.memory_space<vmem>>, vector<1x32xf32>
    %cst_68 = arith.constant dense<0.000000e+00> : vector<16xf32>
    %144 = vector.multi_reduction <add>, %141, %cst_68 [1] : vector<16x32xf32> to vector<16xf32>
    %145 = vector.shape_cast %144 : vector<16xf32> to vector<16x1xf32>
    %cst_69 = arith.constant 3.200000e+01 : f32
    %146 = vector.broadcast %cst_69 : f32 to vector<16x1xf32>
    %147 = arith.divf %145, %146 : vector<16x1xf32>
    %148 = vector.broadcast %147 : vector<16x1xf32> to vector<16x32xf32>
    %149 = arith.subf %141, %148 : vector<16x32xf32>
    %150 = arith.mulf %149, %149 : vector<16x32xf32>
    %cst_70 = arith.constant dense<0.000000e+00> : vector<16xf32>
    %151 = vector.multi_reduction <add>, %150, %cst_70 [1] : vector<16x32xf32> to vector<16xf32>
    %152 = vector.shape_cast %151 : vector<16xf32> to vector<16x1xf32>
    %cst_71 = arith.constant 3.200000e+01 : f32
    %153 = vector.broadcast %cst_71 : f32 to vector<16x1xf32>
    %154 = arith.divf %152, %153 : vector<16x1xf32>
    %cst_72 = arith.constant 9.99999997E-7 : f32
    %155 = vector.broadcast %cst_72 : f32 to vector<16x1xf32>
    %156 = arith.addf %154, %155 : vector<16x1xf32>
    %157 = math.rsqrt %156 : vector<16x1xf32>
    %158 = vector.broadcast %157 : vector<16x1xf32> to vector<16x32xf32>
    %159 = arith.mulf %149, %158 : vector<16x32xf32>
    %160 = vector.broadcast %142 : vector<1x32xf32> to vector<16x32xf32>
    %161 = arith.mulf %159, %160 : vector<16x32xf32>
    %162 = vector.broadcast %143 : vector<1x32xf32> to vector<16x32xf32>
    %163 = arith.addf %161, %162 : vector<16x32xf32>
    %164 = vector.shape_cast %163 : vector<16x32xf32> to vector<2x8x32xf32>
    %c0_73 = arith.constant 0 : index
    %c0_74 = arith.constant 0 : index
    %c0_75 = arith.constant 0 : index
    %165 = vector.load %arg20[%c0_73, %c0_74, %c0_75] : memref<2x8x32xf32, #tpu.memory_space<vmem>>, vector<2x8x32xf32>
    tpu.vector_store %arg20[%c0_73, %c0_74, %c0_75], %164 {strides = array<i32>} : memref<2x8x32xf32, #tpu.memory_space<vmem>>, vector<2x8x32xf32>,
    return
  }
  func.func @transform_0(%arg0: i32) -> (i32, i32, i32) {
    %c0_i32 = arith.constant 0 : i32
    %c0_i32_0 = arith.constant 0 : i32
    %c0_i32_1 = arith.constant 0 : i32
    return %arg0, %c0_i32, %c0_i32_0 : i32, i32, i32
  }
  func.func @transform_1(%arg0: i32) -> (i32, i32, i32) {
    %c0_i32 = arith.constant 0 : i32
    %c0_i32_0 = arith.constant 0 : i32
    %c0_i32_1 = arith.constant 0 : i32
    return %arg0, %c0_i32, %c0_i32_0 : i32, i32, i32
  }
  func.func @transform_2(%arg0: i32) -> (i32, i32, i32) {
    %c0_i32 = arith.constant 0 : i32
    %c0_i32_0 = arith.constant 0 : i32
    %c0_i32_1 = arith.constant 0 : i32
    return %arg0, %c0_i32, %c0_i32_0 : i32, i32, i32
  }
  func.func @transform_3(%arg0: i32) -> (i32, i32) {
    %c0_i32 = arith.constant 0 : i32
    %c0_i32_0 = arith.constant 0 : i32
    %c0_i32_1 = arith.constant 0 : i32
    return %c0_i32, %c0_i32_0 : i32, i32
  }
  func.func @transform_4(%arg0: i32) -> (i32, i32) {
    %c0_i32 = arith.constant 0 : i32
    %c0_i32_0 = arith.constant 0 : i32
    %c0_i32_1 = arith.constant 0 : i32
    return %c0_i32, %c0_i32_0 : i32, i32
  }
  func.func @transform_5(%arg0: i32) -> (i32, i32) {
    %c0_i32 = arith.constant 0 : i32
    %c0_i32_0 = arith.constant 0 : i32
    %c0_i32_1 = arith.constant 0 : i32
    return %c0_i32, %c0_i32_0 : i32, i32
  }
  func.func @transform_6(%arg0: i32) -> (i32, i32) {
    %c0_i32 = arith.constant 0 : i32
    %c0_i32_0 = arith.constant 0 : i32
    %c0_i32_1 = arith.constant 0 : i32
    return %c0_i32, %c0_i32_0 : i32, i32
  }
  func.func @transform_7(%arg0: i32) -> (i32, i32) {
    %c0_i32 = arith.constant 0 : i32
    %c0_i32_0 = arith.constant 0 : i32
    %c0_i32_1 = arith.constant 0 : i32
    return %c0_i32, %c0_i32_0 : i32, i32
  }
  func.func @transform_8(%arg0: i32) -> (i32, i32) {
    %c0_i32 = arith.constant 0 : i32
    %c0_i32_0 = arith.constant 0 : i32
    %c0_i32_1 = arith.constant 0 : i32
    return %c0_i32, %c0_i32_0 : i32, i32
  }
  func.func @transform_9(%arg0: i32) -> (i32, i32) {
    %c0_i32 = arith.constant 0 : i32
    %c0_i32_0 = arith.constant 0 : i32
    %c0_i32_1 = arith.constant 0 : i32
    return %c0_i32, %c0_i32_0 : i32, i32
  }
  func.func @transform_10(%arg0: i32) -> (i32, i32) {
    %c0_i32 = arith.constant 0 : i32
    %c0_i32_0 = arith.constant 0 : i32
    %c0_i32_1 = arith.constant 0 : i32
    return %c0_i32, %c0_i32_0 : i32, i32
  }
  func.func @transform_11(%arg0: i32) -> (i32, i32) {
    %c0_i32 = arith.constant 0 : i32
    %c0_i32_0 = arith.constant 0 : i32
    %c0_i32_1 = arith.constant 0 : i32
    return %c0_i32, %c0_i32_0 : i32, i32
  }
  func.func @transform_12(%arg0: i32) -> (i32, i32) {
    %c0_i32 = arith.constant 0 : i32
    %c0_i32_0 = arith.constant 0 : i32
    %c0_i32_1 = arith.constant 0 : i32
    return %c0_i32, %c0_i32_0 : i32, i32
  }
  func.func @transform_13(%arg0: i32) -> (i32, i32) {
    %c0_i32 = arith.constant 0 : i32
    %c0_i32_0 = arith.constant 0 : i32
    %c0_i32_1 = arith.constant 0 : i32
    return %c0_i32, %c0_i32_0 : i32, i32
  }
  func.func @transform_14(%arg0: i32) -> (i32, i32) {
    %c0_i32 = arith.constant 0 : i32
    %c0_i32_0 = arith.constant 0 : i32
    %c0_i32_1 = arith.constant 0 : i32
    return %c0_i32, %c0_i32_0 : i32, i32
  }
  func.func @transform_15(%arg0: i32) -> (i32, i32) {
    %c0_i32 = arith.constant 0 : i32
    %c0_i32_0 = arith.constant 0 : i32
    %c0_i32_1 = arith.constant 0 : i32
    return %c0_i32, %c0_i32_0 : i32, i32
  }
  func.func @transform_16(%arg0: i32) -> (i32, i32) {
    %c0_i32 = arith.constant 0 : i32
    %c0_i32_0 = arith.constant 0 : i32
    %c0_i32_1 = arith.constant 0 : i32
    return %c0_i32, %c0_i32_0 : i32, i32
  }
  func.func @transform_17(%arg0: i32) -> (i32, i32) {
    %c0_i32 = arith.constant 0 : i32
    %c0_i32_0 = arith.constant 0 : i32
    %c0_i32_1 = arith.constant 0 : i32
    return %c0_i32, %c0_i32_0 : i32, i32
  }
  func.func @transform_18(%arg0: i32) -> (i32, i32) {
    %c0_i32 = arith.constant 0 : i32
    %c0_i32_0 = arith.constant 0 : i32
    %c0_i32_1 = arith.constant 0 : i32
    return %c0_i32, %c0_i32_0 : i32, i32
  }
  func.func @transform_19(%arg0: i32) -> (i32, i32, i32) {
    %c0_i32 = arith.constant 0 : i32
    %c0_i32_0 = arith.constant 0 : i32
    %c0_i32_1 = arith.constant 0 : i32
    return %arg0, %c0_i32, %c0_i32_0 : i32, i32, i32
  }
}

</mosaic_0001>

<llo_original>
// kernel: cross_attention_forward.1
$region0: #{cross_attention_forward.1}
  #allocation0 [shape = 'u32[]', space=smem, size = 0x4, offset = 0x4, fixed_abs, tag = 'smem constant byte address 0x4 - core index']
  #allocation1 [shape = 'u32[72,128]{1,0:T(1,128)}', space=vmem, size = 0x9000, scoped, tag = 'internal scratch']
  %s0 = inlined_call_operand.vmem [shape: f32[2,8,32], index: 0, kind: input, shape index: {}]
  %s1 = inlined_call_operand.vmem [shape: f32[2,8,48], index: 1, kind: input, shape index: {}]
  %s2 = inlined_call_operand.hbm [shape: f32[2,8,48], index: 2, kind: input, shape index: {}]
  %s3 = inlined_call_operand.vmem [shape: bf16[32,256], index: 3, kind: input, shape index: {}]
  %s4 = inlined_call_operand.vmem [shape: f32[1,256], index: 4, kind: input, shape index: {}]
  %s5 = inlined_call_operand.vmem [shape: bf16[48,256], index: 5, kind: input, shape index: {}]
  %s6 = inlined_call_operand.vmem [shape: f32[1,256], index: 6, kind: input, shape index: {}]
  %s7 = inlined_call_operand.vmem [shape: bf16[48,256], index: 7, kind: input, shape index: {}]
  %s8 = inlined_call_operand.vmem [shape: f32[1,256], index: 8, kind: input, shape index: {}]
  %s9 = inlined_call_operand.hbm [shape: bf16[256,256], index: 9, kind: input, shape index: {}]
  %s10 = inlined_call_operand.hbm [shape: f32[1,256], index: 10, kind: input, shape index: {}]
  %s11 = inlined_call_operand.vmem [shape: bf16[256,32], index: 11, kind: input, shape index: {}]
  %s12 = inlined_call_operand.vmem [shape: f32[1,32], index: 12, kind: input, shape index: {}]
  %s13 = inlined_call_operand.vmem [shape: f32[1,32], index: 13, kind: input, shape index: {}]
  %s14 = inlined_call_operand.hbm [shape: f32[1,32], index: 14, kind: input, shape index: {}]
  %s15 = inlined_call_operand.hbm [shape: bf16[32,32], index: 15, kind: input, shape index: {}]
  %s16 = inlined_call_operand.hbm [shape: f32[1,32], index: 16, kind: input, shape index: {}]
  %s17 = inlined_call_operand.vmem [shape: f32[1,32], index: 17, kind: input, shape index: {}]
  %s18 = inlined_call_operand.hbm [shape: f32[1,32], index: 18, kind: input, shape index: {}]
  %s19 = inlined_call_operand.hbm [shape: f32[2,8,32], index: 19, kind: output, shape index: {}]
  %s20 = sld [smem:[#allocation0]]
  $region114: #{cross_attention_forward.1} parent=0
    _
  %s22 = ssub.s32 1, %s20
  %s23 = scalar_select 0, %s22, %s20
  $region1: #{cross_attention_forward.1} parent=0
    #allocation2 [shape = 'u8[8192]{0}', space=vmem, size = 0x2000, scoped, tag = 'input window, operand 2, single buffered']
    #allocation3 [shape = 's32[1]{0}', space=sflag, size = 0x4, scoped, tag = 'scoped memory for cross_attention_forward.1']
    #allocation4 [shape = 's32[1]{0}', space=sflag, size = 0x4, scoped, tag = 'scoped memory for cross_attention_forward.1']
    #allocation5 [shape = 'u8[131072]{0}', space=vmem, size = 0x20000, scoped, tag = 'input window, operand 9, single buffered']
    #allocation6 [shape = 's32[1]{0}', space=sflag, size = 0x4, scoped, tag = 'scoped memory for cross_attention_forward.1']
    #allocation7 [shape = 'u8[1024]{0}', space=vmem, size = 0x400, scoped, tag = 'input window, operand 10, single buffered']
    #allocation8 [shape = 'u8[512]{0}', space=vmem, size = 0x400, scoped, tag = 'input window, operand 14, single buffered']
    #allocation9 [shape = 's32[1]{0}', space=sflag, size = 0x4, scoped, tag = 'scoped memory for cross_attention_forward.1']
    #allocation10 [shape = 'u8[8192]{0}', space=vmem, size = 0x2000, scoped, tag = 'input window, operand 15, single buffered']
    #allocation11 [shape = 'u8[512]{0}', space=vmem, size = 0x400, scoped, tag = 'input window, operand 16, single buffered']
    #allocation12 [shape = 's32[1]{0}', space=sflag, size = 0x4, scoped, tag = 'scoped memory for cross_attention_forward.1']
    #allocation13 [shape = 'u8[512]{0}', space=vmem, size = 0x400, scoped, tag = 'input window, operand 18, single buffered']
    #allocation14 [shape = 'u8[8192]{0}', space=vmem, size = 0x2000, scoped, tag = 'output window, operand 0, single buffered']
    %24 = vsyncpa [#allocation3], 0
    %25 = vsyncpa [#allocation6], 0
    %26 = vsyncpa [#allocation9], 0
    %27 = vsyncpa [#allocation12], 0
    %28 = vsyncpa [#allocation4], 0
    // Predicated region
    $region2: #{cross_attention_forward.1} parent=1 // pred_check
      _
    $region3: #{cross_attention_forward.1} parent=1 // pred_check_branch
      %30 = sbr.rel (0) target = $region5
    $region4: #{cross_attention_forward.1} parent=1 // pred_region
      _
    $region5: #{cross_attention_forward.1} parent=1 // pred_fallthru
      _
    // Predicated region
    $region6: #{cross_attention_forward.1} parent=1 // pred_check
      _
    $region7: #{cross_attention_forward.1} parent=1 // pred_check_branch
      %32 = sbr.rel (0) target = $region9
    $region8: #{cross_attention_forward.1} parent=1 // pred_region
      _
    $region9: #{cross_attention_forward.1} parent=1 // pred_fallthru
      _
    // Predicated region
    $region10: #{cross_attention_forward.1} parent=1 // pred_check
      _
    $region11: #{cross_attention_forward.1} parent=1 // pred_check_branch
      %34 = sbr.rel (0) target = $region13
    $region12: #{cross_attention_forward.1} parent=1 // pred_region
      %36 = vsyncadd [#allocation3], 0
      %s37 = sshll.u32 %s2, 4
      %s38 = int_to_ptr.hbm [resolvable:$true] %s37
      %s39 = sshll.u32 [#allocation2], 4
      %s40 = int_to_ptr.vmem [resolvable:$true] %s39
      %45 = dma.hbm_to_vmem [thread:$0]  %s38, 256, %s40, [#allocation3], 128, 128, 8
    $region13: #{cross_attention_forward.1} parent=1 // pred_fallthru
      _
    // Predicated region
    $region14: #{cross_attention_forward.1} parent=1 // pred_check
      _
    $region15: #{cross_attention_forward.1} parent=1 // pred_check_branch
      %47 = sbr.rel (0) target = $region17
    $region16: #{cross_attention_forward.1} parent=1 // pred_region
      _
    $region17: #{cross_attention_forward.1} parent=1 // pred_fallthru
      _
    // Predicated region
    $region18: #{cross_attention_forward.1} parent=1 // pred_check
      _
    $region19: #{cross_attention_forward.1} parent=1 // pred_check_branch
      %49 = sbr.rel (0) target = $region21
    $region20: #{cross_attention_forward.1} parent=1 // pred_region
      _
    $region21: #{cross_attention_forward.1} parent=1 // pred_fallthru
      _
    // Predicated region
    $region22: #{cross_attention_forward.1} parent=1 // pred_check
      _
    $region23: #{cross_attention_forward.1} parent=1 // pred_check_branch
      %51 = sbr.rel (0) target = $region25
    $region24: #{cross_attention_forward.1} parent=1 // pred_region
      _
    $region25: #{cross_attention_forward.1} parent=1 // pred_fallthru
      _
    // Predicated region
    $region26: #{cross_attention_forward.1} parent=1 // pred_check
      _
    $region27: #{cross_attention_forward.1} parent=1 // pred_check_branch
      %53 = sbr.rel (0) target = $region29
    $region28: #{cross_attention_forward.1} parent=1 // pred_region
      _
    $region29: #{cross_attention_forward.1} parent=1 // pred_fallthru
      _
    // Predicated region
    $region30: #{cross_attention_forward.1} parent=1 // pred_check
      _
    $region31: #{cross_attention_forward.1} parent=1 // pred_check_branch
      %55 = sbr.rel (0) target = $region33
    $region32: #{cross_attention_forward.1} parent=1 // pred_region
      _
    $region33: #{cross_attention_forward.1} parent=1 // pred_fallthru
      _
    // Predicated region
    $region34: #{cross_attention_forward.1} parent=1 // pred_check
      _
    $region35: #{cross_attention_forward.1} parent=1 // pred_check_branch
      %57 = sbr.rel (0) target = $region37
    $region36: #{cross_attention_forward.1} parent=1 // pred_region
      _
    $region37: #{cross_attention_forward.1} parent=1 // pred_fallthru
      _
    // Predicated region
    $region38: #{cross_attention_forward.1} parent=1 // pred_check
      _
    $region39: #{cross_attention_forward.1} parent=1 // pred_check_branch
      %59 = sbr.rel (0) target = $region41
    $region40: #{cross_attention_forward.1} parent=1 // pred_region
      %61 = vsyncadd [#allocation6], 0
      %s62 = sshll.u32 %s9, 4
      %s63 = int_to_ptr.hbm [resolvable:$true] %s62
      %s64 = sshll.u32 [#allocation5], 4
      %s65 = int_to_ptr.vmem [resolvable:$true] %s64
      %70 = dma.hbm_to_vmem [thread:$0]  %s63, 4096, %s65, [#allocation6], 128, 128, 8
    $region41: #{cross_attention_forward.1} parent=1 // pred_fallthru
      _
    // Predicated region
    $region42: #{cross_attention_forward.1} parent=1 // pred_check
      _
    $region43: #{cross_attention_forward.1} parent=1 // pred_check_branch
      %72 = sbr.rel (0) target = $region45
    $region44: #{cross_attention_forward.1} parent=1 // pred_region
      %74 = vsyncadd [#allocation6], 0
      %s76 = sshll.u32 %s10, 4
      %s77 = int_to_ptr.hbm [resolvable:$true] %s76
      %s78 = sshll.u32 [#allocation7], 4
      %s79 = int_to_ptr.vmem [resolvable:$true] %s78
      %81 = dma.hbm_to_vmem [thread:$0]  %s77, 32, %s79, [#allocation6]
    $region45: #{cross_attention_forward.1} parent=1 // pred_fallthru
      _
    // Predicated region
    $region46: #{cross_attention_forward.1} parent=1 // pred_check
      _
    $region47: #{cross_attention_forward.1} parent=1 // pred_check_branch
      %83 = sbr.rel (0) target = $region49
    $region48: #{cross_attention_forward.1} parent=1 // pred_region
      _
    $region49: #{cross_attention_forward.1} parent=1 // pred_fallthru
      _
    // Predicated region
    $region50: #{cross_attention_forward.1} parent=1 // pred_check
      _
    $region51: #{cross_attention_forward.1} parent=1 // pred_check_branch
      %85 = sbr.rel (0) target = $region53
    $region52: #{cross_attention_forward.1} parent=1 // pred_region
      _
    $region53: #{cross_attention_forward.1} parent=1 // pred_fallthru
      _
    // Predicated region
    $region54: #{cross_attention_forward.1} parent=1 // pred_check
      _
    $region55: #{cross_attention_forward.1} parent=1 // pred_check_branch
      %87 = sbr.rel (0) target = $region57
    $region56: #{cross_attention_forward.1} parent=1 // pred_region
      _
    $region57: #{cross_attention_forward.1} parent=1 // pred_fallthru
      _
    // Predicated region
    $region58: #{cross_attention_forward.1} parent=1 // pred_check
      _
    $region59: #{cross_attention_forward.1} parent=1 // pred_check_branch
      %89 = sbr.rel (0) target = $region61
    $region60: #{cross_attention_forward.1} parent=1 // pred_region
      %91 = vsyncadd [#allocation9], 0
      %s93 = sshll.u32 %s14, 4
      %s94 = int_to_ptr.hbm [resolvable:$true] %s93
      %s95 = sshll.u32 [#allocation8], 4
      %s96 = int_to_ptr.vmem [resolvable:$true] %s95
      %98 = dma.hbm_to_vmem [thread:$0]  %s94, 16, %s96, [#allocation9]
    $region61: #{cross_attention_forward.1} parent=1 // pred_fallthru
      _
    // Predicated region
    $region62: #{cross_attention_forward.1} parent=1 // pred_check
      _
    $region63: #{cross_attention_forward.1} parent=1 // pred_check_branch
      %100 = sbr.rel (0) target = $region65
    $region64: #{cross_attention_forward.1} parent=1 // pred_region
      %102 = vsyncadd [#allocation9], 0
      %s103 = sshll.u32 %s15, 4
      %s104 = int_to_ptr.hbm [resolvable:$true] %s103
      %s105 = sshll.u32 [#allocation10], 4
      %s106 = int_to_ptr.vmem [resolvable:$true] %s105
      %111 = dma.hbm_to_vmem [thread:$0]  %s104, 256, %s106, [#allocation9], 64, 64, 4
    $region65: #{cross_attention_forward.1} parent=1 // pred_fallthru
      _
    // Predicated region
    $region66: #{cross_attention_forward.1} parent=1 // pred_check
      _
    $region67: #{cross_attention_forward.1} parent=1 // pred_check_branch
      %113 = sbr.rel (0) target = $region69
    $region68: #{cross_attention_forward.1} parent=1 // pred_region
      %115 = vsyncadd [#allocation12], 0
      %s117 = sshll.u32 %s16, 4
      %s118 = int_to_ptr.hbm [resolvable:$true] %s117
      %s119 = sshll.u32 [#allocation11], 4
      %s120 = int_to_ptr.vmem [resolvable:$true] %s119
      %122 = dma.hbm_to_vmem [thread:$0]  %s118, 16, %s120, [#allocation12]
    $region69: #{cross_attention_forward.1} parent=1 // pred_fallthru
      _
    // Predicated region
    $region70: #{cross_attention_forward.1} parent=1 // pred_check
      _
    $region71: #{cross_attention_forward.1} parent=1 // pred_check_branch
      %124 = sbr.rel (0) target = $region73
    $region72: #{cross_attention_forward.1} parent=1 // pred_region
      _
    $region73: #{cross_attention_forward.1} parent=1 // pred_fallthru
      _
    // Predicated region
    $region74: #{cross_attention_forward.1} parent=1 // pred_check
      _
    $region75: #{cross_attention_forward.1} parent=1 // pred_check_branch
      %126 = sbr.rel (0) target = $region77
    $region76: #{cross_attention_forward.1} parent=1 // pred_region
      %128 = vsyncadd [#allocation12], 0
      %s130 = sshll.u32 %s18, 4
      %s131 = int_to_ptr.hbm [resolvable:$true] %s130
      %s132 = sshll.u32 [#allocation13], 4
      %s133 = int_to_ptr.vmem [resolvable:$true] %s132
      %135 = dma.hbm_to_vmem [thread:$0]  %s131, 16, %s133, [#allocation12]
    $region77: #{cross_attention_forward.1} parent=1 // pred_fallthru
      _
    // Predicated region
    $region78: #{cross_attention_forward.1} parent=1 // pred_check
      _
    $region79: #{cross_attention_forward.1} parent=1 // pred_check_branch
      %137 = sbr.rel (0) target = $region81
    $region80: #{cross_attention_forward.1} parent=1 // pred_region
      %139 = dma.done [#allocation3], 256
    $region81: #{cross_attention_forward.1} parent=1 // pred_fallthru
      _
    // Predicated region
    $region82: #{cross_attention_forward.1} parent=1 // pred_check
      _
    $region83: #{cross_attention_forward.1} parent=1 // pred_check_branch
      %141 = sbr.rel (0) target = $region85
    $region84: #{cross_attention_forward.1} parent=1 // pred_region
      %143 = dma.done [#allocation6], 4096
    $region85: #{cross_attention_forward.1} parent=1 // pred_fallthru
      _
    // Predicated region
    $region86: #{cross_attention_forward.1} parent=1 // pred_check
      _
    $region87: #{cross_attention_forward.1} parent=1 // pred_check_branch
      %145 = sbr.rel (0) target = $region89
    $region88: #{cross_attention_forward.1} parent=1 // pred_region
      %147 = dma.done [#allocation6], 32
    $region89: #{cross_attention_forward.1} parent=1 // pred_fallthru
      _
    // Predicated region
    $region90: #{cross_attention_forward.1} parent=1 // pred_check
      _
    $region91: #{cross_attention_forward.1} parent=1 // pred_check_branch
      %149 = sbr.rel (0) target = $region93
    $region92: #{cross_attention_forward.1} parent=1 // pred_region
      %151 = dma.done [#allocation9], 16
    $region93: #{cross_attention_forward.1} parent=1 // pred_fallthru
      _
    // Predicated region
    $region94: #{cross_attention_forward.1} parent=1 // pred_check
      _
    $region95: #{cross_attention_forward.1} parent=1 // pred_check_branch
      %153 = sbr.rel (0) target = $region97
    $region96: #{cross_attention_forward.1} parent=1 // pred_region
      %155 = dma.done [#allocation9], 256
    $region97: #{cross_attention_forward.1} parent=1 // pred_fallthru
      _
    // Predicated region
    $region98: #{cross_attention_forward.1} parent=1 // pred_check
      _
    $region99: #{cross_attention_forward.1} parent=1 // pred_check_branch
      %157 = sbr.rel (0) target = $region101
    $region100: #{cross_attention_forward.1} parent=1 // pred_region
      %159 = dma.done [#allocation12], 16
    $region101: #{cross_attention_forward.1} parent=1 // pred_fallthru
      _
    // Predicated region
    $region102: #{cross_attention_forward.1} parent=1 // pred_check
      _
    $region103: #{cross_attention_forward.1} parent=1 // pred_check_branch
      %161 = sbr.rel (0) target = $region105
    $region104: #{cross_attention_forward.1} parent=1 // pred_region
      %163 = dma.done [#allocation12], 16
    $region105: #{cross_attention_forward.1} parent=1 // pred_fallthru
      _
    %v165 = vld [vmem:[%s0] sm:$0xff]
    %v166 = vld [vmem:[%s0 + $0x8] sm:$0xff]
    %v167 = vpack.c.bf16 %v166, %v165
    %v168 = vld [vmem:[%s1] sm:$0xff]
    %v169 = vld [vmem:[%s1 + $0x8] sm:$0xff]
    %v170 = vpack.c.bf16 %v169, %v168
    %v171 = vld [vmem:[#allocation2] sm:$0xff]
    %v172 = vld [vmem:[#allocation2 + $0x8] sm:$0xff]
    %v173 = vpack.c.bf16 %v172, %v171
    %v174 = vld [vmem:[%s3] sm:$0xff]
    %v175 = vld [vmem:[%s3 + $0x8] sm:$0xff]
    %v176 = vld [vmem:[%s3 + $0x10] sm:$0xff]
    %v177 = vld [vmem:[%s3 + $0x18] sm:$0xff]
    %v178 = vld [vmem:[%s4] sm:$0x3]
    %v180 = vperm.slane %v178, 0
    %v181 = vperm.slane %v178, 1
    %v188 = vunpack.c.l.b16 %v174
    %v189 = vunpack.c.h.b16 %v174
    %v190 = vunpack.c.l.b16 %v175
    %v191 = vunpack.c.h.b16 %v175
    %v192 = vunpack.c.l.b16 %v176
    %v193 = vunpack.c.h.b16 %v176
    %v194 = vunpack.c.l.b16 %v177
    %v195 = vunpack.c.h.b16 %v177
    %v196 = vpack.c.b16 %v190, %v188
    %v197 = vpack.c.b16 %v191, %v189
    %v198 = vpack.c.b16 %v194, %v192
    %v199 = vpack.c.b16 %v195, %v193
    %vm204 = vcmask 261120
    %v206 = vsel %vm204, %v167, 0
    %208 = vmatpush.bf16.msra.mxu0 0
    %209 = vmatpush.bf16.msra.mxu0 0
    %210 = vmatpush.bf16.msra.mxu0 0
    %211 = vmatpush.bf16.msra.mxu0 0
    %212 = vmatpush.bf16.msra.mxu0 0
    %213 = vmatpush.bf16.msra.mxu0 0
    %214 = vmatpush.bf16.msra.mxu0 %v198
    %215 = vmatpush.bf16.msra.mxu0 %v196
    %216 = vmatmul.bf16.gmra.mxu0 %v206
    %v217 = vpop.f32.mrf.mxu0
    %v218 = vadd.f32 %v180, %v217
    %v219 = vpop.f32.mrf.mxu0
    %v220 = vadd.f32 %v180, %v219
    %221 = vdwg.mxu0
    %222 = vmatpush.bf16.msra.mxu0 0
    %223 = vmatpush.bf16.msra.mxu0 0
    %224 = vmatpush.bf16.msra.mxu0 0
    %225 = vmatpush.bf16.msra.mxu0 0
    %226 = vmatpush.bf16.msra.mxu0 0
    %227 = vmatpush.bf16.msra.mxu0 0
    %228 = vmatpush.bf16.msra.mxu0 %v199
    %229 = vmatpush.bf16.msra.mxu0 %v197
    %230 = vmatmul.bf16.gmra.mxu0 %v206
    %v231 = vpop.f32.mrf.mxu0
    %v232 = vadd.f32 %v181, %v231
    %v233 = vpop.f32.mrf.mxu0
    %v234 = vadd.f32 %v181, %v233
    %235 = vdwg.mxu0
    %v236 = vld [vmem:[%s5] sm:$0xff]
    %v237 = vld [vmem:[%s5 + $0x8] sm:$0xff]
    %v238 = vld [vmem:[%s5 + $0x10] sm:$0xff]
    %v239 = vld [vmem:[%s5 + $0x18] sm:$0xff]
    %v240 = vld [vmem:[%s5 + $0x20] sm:$0xff]
    %v241 = vld [vmem:[%s5 + $0x28] sm:$0xff]
    %v242 = vld [vmem:[%s6] sm:$0x3]
    %v244 = vperm.slane %v242, 0
    %v245 = vperm.slane %v242, 1
    %v254 = vunpack.c.l.b16 %v236
    %v255 = vunpack.c.h.b16 %v236
    %v256 = vunpack.c.l.b16 %v237
    %v257 = vunpack.c.h.b16 %v237
    %v258 = vunpack.c.l.b16 %v238
    %v259 = vunpack.c.h.b16 %v238
    %v260 = vunpack.c.l.b16 %v239
    %v261 = vunpack.c.h.b16 %v239
    %v262 = vunpack.c.l.b16 %v240
    %v263 = vunpack.c.h.b16 %v240
    %v264 = vunpack.c.l.b16 %v241
    %v265 = vunpack.c.h.b16 %v241
    %v266 = vpack.c.b16 %v256, %v254
    %v267 = vpack.c.b16 %v257, %v255
    %v268 = vpack.c.b16 %v260, %v258
    %v269 = vpack.c.b16 %v261, %v259
    %v270 = vpack.c.b16 %v264, %v262
    %v271 = vpack.c.b16 %v265, %v263
    %vm278 = vcmask 392192
    %v280 = vsel %vm278, %v170, 0
    %282 = vmatpush.bf16.msra.mxu0 0
    %283 = vmatpush.bf16.msra.mxu0 0
    %284 = vmatpush.bf16.msra.mxu0 0
    %285 = vmatpush.bf16.msra.mxu0 0
    %286 = vmatpush.bf16.msra.mxu0 0
    %287 = vmatpush.bf16.msra.mxu0 %v270
    %288 = vmatpush.bf16.msra.mxu0 %v268
    %289 = vmatpush.bf16.msra.mxu0 %v266
    %290 = vmatmul.bf16.gmra.mxu0 %v280
    %v291 = vpop.f32.mrf.mxu0
    %v292 = vadd.f32 %v244, %v291
    %v293 = vpop.f32.mrf.mxu0
    %v294 = vadd.f32 %v244, %v293
    %295 = vdwg.mxu0
    %296 = vmatpush.bf16.msra.mxu0 0
    %297 = vmatpush.bf16.msra.mxu0 0
    %298 = vmatpush.bf16.msra.mxu0 0
    %299 = vmatpush.bf16.msra.mxu0 0
    %300 = vmatpush.bf16.msra.mxu0 0
    %301 = vmatpush.bf16.msra.mxu0 %v271
    %302 = vmatpush.bf16.msra.mxu0 %v269
    %303 = vmatpush.bf16.msra.mxu0 %v267
    %304 = vmatmul.bf16.gmra.mxu0 %v280
    %v305 = vpop.f32.mrf.mxu0
    %v306 = vadd.f32 %v245, %v305
    %v307 = vpop.f32.mrf.mxu0
    %v308 = vadd.f32 %v245, %v307
    %309 = vdwg.mxu0
    %v310 = vld [vmem:[%s7] sm:$0xff]
    %v311 = vld [vmem:[%s7 + $0x8] sm:$0xff]
    %v312 = vld [vmem:[%s7 + $0x10] sm:$0xff]
    %v313 = vld [vmem:[%s7 + $0x18] sm:$0xff]
    %v314 = vld [vmem:[%s7 + $0x20] sm:$0xff]
    %v315 = vld [vmem:[%s7 + $0x28] sm:$0xff]
    %v316 = vld [vmem:[%s8] sm:$0x3]
    %v318 = vperm.slane %v316, 0
    %v319 = vperm.slane %v316, 1
    %v328 = vunpack.c.l.b16 %v310
    %v329 = vunpack.c.h.b16 %v310
    %v330 = vunpack.c.l.b16 %v311
    %v331 = vunpack.c.h.b16 %v311
    %v332 = vunpack.c.l.b16 %v312
    %v333 = vunpack.c.h.b16 %v312
    %v334 = vunpack.c.l.b16 %v313
    %v335 = vunpack.c.h.b16 %v313
    %v336 = vunpack.c.l.b16 %v314
    %v337 = vunpack.c.h.b16 %v314
    %v338 = vunpack.c.l.b16 %v315
    %v339 = vunpack.c.h.b16 %v315
    %v340 = vpack.c.b16 %v330, %v328
    %v341 = vpack.c.b16 %v331, %v329
    %v342 = vpack.c.b16 %v334, %v332
    %v343 = vpack.c.b16 %v335, %v333
    %v344 = vpack.c.b16 %v338, %v336
    %v345 = vpack.c.b16 %v339, %v337
    %v353 = vsel %vm278, %v173, 0
    %355 = vmatpush.bf16.msra.mxu0 0
    %356 = vmatpush.bf16.msra.mxu0 0
    %357 = vmatpush.bf16.msra.mxu0 0
    %358 = vmatpush.bf16.msra.mxu0 0
    %359 = vmatpush.bf16.msra.mxu0 0
    %360 = vmatpush.bf16.msra.mxu0 %v344
    %361 = vmatpush.bf16.msra.mxu0 %v342
    %362 = vmatpush.bf16.msra.mxu0 %v340
    %363 = vmatmul.bf16.gmra.mxu0 %v353
    %v364 = vpop.f32.mrf.mxu0
    %v365 = vadd.f32 %v318, %v364
    %v366 = vpop.f32.mrf.mxu0
    %v367 = vadd.f32 %v318, %v366
    %368 = vdwg.mxu0
    %369 = vmatpush.bf16.msra.mxu0 0
    %370 = vmatpush.bf16.msra.mxu0 0
    %371 = vmatpush.bf16.msra.mxu0 0
    %372 = vmatpush.bf16.msra.mxu0 0
    %373 = vmatpush.bf16.msra.mxu0 0
    %374 = vmatpush.bf16.msra.mxu0 %v345
    %375 = vmatpush.bf16.msra.mxu0 %v343
    %376 = vmatpush.bf16.msra.mxu0 %v341
    %377 = vmatmul.bf16.gmra.mxu0 %v353
    %v378 = vpop.f32.mrf.mxu0
    %v379 = vadd.f32 %v319, %v378
    %v380 = vpop.f32.mrf.mxu0
    %v381 = vadd.f32 %v319, %v380
    %382 = vdwg.mxu0
    %v383 = vpack.c.bf16 %v232, %v218
    %v384 = vpack.c.bf16 %v234, %v220
    %v385 = vpack.c.bf16 %v306, %v292
    %v386 = vpack.c.bf16 %v308, %v294
    %v387 = vpack.c.bf16 %v379, %v365
    %v388 = vpack.c.bf16 %v381, %v367
    %vm389 = vcmask 523264
    %v391 = vsel %vm389, %v383, 0
    %v394 = vsel %vm389, %v385, 0
    %396 = vmatpush.bf16.xpose.msra.mxu0 0
    %397 = vmatpush.bf16.xpose.msra.mxu0 0
    %398 = vmatpush.bf16.xpose.msra.mxu0 0
    %399 = vmatpush.bf16.xpose.msra.mxu0 0
    %400 = vmatpush.bf16.xpose.msra.mxu0 0
    %401 = vmatpush.bf16.xpose.msra.mxu0 0
    %402 = vmatpush.bf16.xpose.msra.mxu0 0
    %403 = vmatpush.bf16.xpose.msra.mxu0 %v394
    %404 = vmatmul.bf16.gmra.mxu0 %v391
    %v405 = vpop.f32.mrf.mxu0
    %v406 = vadd.f32 0.0, %v405
    %v407 = vpop.f32.mrf.mxu0
    %408 = vdwg.mxu0
    %v410 = vsel %vm389, %v384, 0
    %v413 = vsel %vm389, %v386, 0
    %415 = vmatpush.bf16.xpose.msra.mxu0 0
    %416 = vmatpush.bf16.xpose.msra.mxu0 0
    %417 = vmatpush.bf16.xpose.msra.mxu0 0
    %418 = vmatpush.bf16.xpose.msra.mxu0 0
    %419 = vmatpush.bf16.xpose.msra.mxu0 0
    %420 = vmatpush.bf16.xpose.msra.mxu0 0
    %421 = vmatpush.bf16.xpose.msra.mxu0 0
    %422 = vmatpush.bf16.xpose.msra.mxu0 %v413
    %423 = vmatmul.bf16.gmra.mxu0 %v410
    %v424 = vpop.f32.mrf.mxu0
    %v425 = vadd.f32 0.0, %v424
    %v426 = vpop.f32.mrf.mxu0
    %427 = vdwg.mxu0
    %vm428 = vcmask 64512
    %v429 = vsel %vm428, %v406, -inf
    %430 = vmax.xlane.f32.xlu0 %v429
    %v431 = vpop.xlane.xlu0 %430
    %v432 = vsel %vm428, %v425, -inf
    %433 = vmax.xlane.f32.xlu0 %v432
    %v434 = vpop.xlane.xlu0 %433
    %v435 = vsub.f32 %v406, %v431
    %v436 = vsub.f32 %v425, %v434
    %v437 = vmul.f32 %v435, 1.442695
    %v438 = vpow.pop %v437
    %v439 = vmul.f32 %v436, 1.442695
    %v440 = vpow.pop %v439
    %v441 = vsel %vm428, %v438, 0.0
    %442 = vadd.xlane.f32.xlu0 %v441
    %v443 = vpop.xlane.xlu0 %442
    %v444 = vsel %vm428, %v440, 0.0
    %445 = vadd.xlane.f32.xlu0 %v444
    %v446 = vpop.xlane.xlu0 %445
    %v447 = vrcp.pop %v443
    %v448 = vrcp.pop %v446
    %v449 = vmul.f32 %v438, %v447
    %v450 = vmul.f32 %v440, %v448
    %v451 = vpack.c.bf16 %v449, %v449
    %v452 = vpack.c.bf16 %v450, %v450
    %v454 = vsel %vm428, %v451, 0
    %vm456 = vcmask 1043456
    %v458 = vsel %vm456, %v387, 0
    %460 = vmatpush.bf16.msra.mxu0 0
    %461 = vmatpush.bf16.msra.mxu0 0
    %462 = vmatpush.bf16.msra.mxu0 0
    %463 = vmatpush.bf16.msra.mxu0 0
    %464 = vmatpush.bf16.msra.mxu0 0
    %465 = vmatpush.bf16.msra.mxu0 0
    %466 = vmatpush.bf16.msra.mxu0 0
    %467 = vmatpush.bf16.msra.mxu0 %v458
    %468 = vmatmul.bf16.gmra.mxu0 %v454
    %v469 = vpop.f32.mrf.mxu0
    %v470 = vadd.f32 0.0, %v469
    %v471 = vpop.f32.mrf.mxu0
    %472 = vdwg.mxu0
    %v474 = vsel %vm428, %v452, 0
    %v477 = vsel %vm456, %v388, 0
    %479 = vmatpush.bf16.msra.mxu0 0
    %480 = vmatpush.bf16.msra.mxu0 0
    %481 = vmatpush.bf16.msra.mxu0 0
    %482 = vmatpush.bf16.msra.mxu0 0
    %483 = vmatpush.bf16.msra.mxu0 0
    %484 = vmatpush.bf16.msra.mxu0 0
    %485 = vmatpush.bf16.msra.mxu0 0
    %486 = vmatpush.bf16.msra.mxu0 %v477
    %487 = vmatmul.bf16.gmra.mxu0 %v474
    %v488 = vpop.f32.mrf.mxu0
    %v489 = vadd.f32 0.0, %v488
    %v490 = vpop.f32.mrf.mxu0
    %491 = vdwg.mxu0
    %v493 = vunpack.c.l.b16 %v383
    %v494 = vpack.c.b16 %v493, %v493
    %495 = vrot.lane.b32.xlu0 %v494, 64
    %v496 = vpop.permute.xlu0 %495
    %v498 = vunpack.c.l.b16 %v385
    %v499 = vpack.c.b16 %v498, %v498
    %500 = vrot.lane.b32.xlu0 %v499, 64
    %v501 = vpop.permute.xlu0 %500
    %v503 = vsel %vm389, %v496, 0
    %v506 = vsel %vm389, %v501, 0
    %508 = vmatpush.bf16.xpose.msra.mxu0 0
    %509 = vmatpush.bf16.xpose.msra.mxu0 0
    %510 = vmatpush.bf16.xpose.msra.mxu0 0
    %511 = vmatpush.bf16.xpose.msra.mxu0 0
    %512 = vmatpush.bf16.xpose.msra.mxu0 0
    %513 = vmatpush.bf16.xpose.msra.mxu0 0
    %514 = vmatpush.bf16.xpose.msra.mxu0 0
    %515 = vmatpush.bf16.xpose.msra.mxu0 %v506
    %516 = vmatmul.bf16.gmra.mxu0 %v503
    %v517 = vpop.f32.mrf.mxu0
    %v518 = vadd.f32 0.0, %v517
    %v519 = vpop.f32.mrf.mxu0
    %520 = vdwg.mxu0
    %v522 = vunpack.c.l.b16 %v384
    %v523 = vpack.c.b16 %v522, %v522
    %524 = vrot.lane.b32.xlu0 %v523, 64
    %v525 = vpop.permute.xlu0 %524
    %v527 = vunpack.c.l.b16 %v386
    %v528 = vpack.c.b16 %v527, %v527
    %529 = vrot.lane.b32.xlu0 %v528, 64
    %v530 = vpop.permute.xlu0 %529
    %v532 = vsel %vm389, %v525, 0
    %v535 = vsel %vm389, %v530, 0
    %537 = vmatpush.bf16.xpose.msra.mxu0 0
    %538 = vmatpush.bf16.xpose.msra.mxu0 0
    %539 = vmatpush.bf16.xpose.msra.mxu0 0
    %540 = vmatpush.bf16.xpose.msra.mxu0 0
    %541 = vmatpush.bf16.xpose.msra.mxu0 0
    %542 = vmatpush.bf16.xpose.msra.mxu0 0
    %543 = vmatpush.bf16.xpose.msra.mxu0 0
    %544 = vmatpush.bf16.xpose.msra.mxu0 %v535
    %545 = vmatmul.bf16.gmra.mxu0 %v532
    %v546 = vpop.f32.mrf.mxu0
    %v547 = vadd.f32 0.0, %v546
    %v548 = vpop.f32.mrf.mxu0
    %549 = vdwg.mxu0
    %v550 = vsel %vm428, %v518, -inf
    %551 = vmax.xlane.f32.xlu0 %v550
    %v552 = vpop.xlane.xlu0 %551
    %v553 = vsel %vm428, %v547, -inf
    %554 = vmax.xlane.f32.xlu0 %v553
    %v555 = vpop.xlane.xlu0 %554
    %v556 = vsub.f32 %v518, %v552
    %v557 = vsub.f32 %v547, %v555
    %v558 = vmul.f32 %v556, 1.442695
    %v559 = vpow.pop %v558
    %v560 = vmul.f32 %v557, 1.442695
    %v561 = vpow.pop %v560
    %v562 = vsel %vm428, %v559, 0.0
    %563 = vadd.xlane.f32.xlu0 %v562
    %v564 = vpop.xlane.xlu0 %563
    %v565 = vsel %vm428, %v561, 0.0
    %566 = vadd.xlane.f32.xlu0 %v565
    %v567 = vpop.xlane.xlu0 %566
    %v568 = vrcp.pop %v564
    %v569 = vrcp.pop %v567
    %v570 = vmul.f32 %v559, %v568
    %v571 = vmul.f32 %v561, %v569
    %v572 = vpack.c.bf16 %v570, %v570
    %v573 = vpack.c.bf16 %v571, %v571
    %v575 = vunpack.c.l.b16 %v387
    %v576 = vpack.c.b16 %v575, %v575
    %577 = vrot.lane.b32.xlu0 %v576, 64
    %v578 = vpop.permute.xlu0 %577
    %v580 = vsel %vm428, %v572, 0
    %v583 = vsel %vm456, %v578, 0
    %585 = vmatpush.bf16.msra.mxu0 0
    %586 = vmatpush.bf16.msra.mxu0 0
    %587 = vmatpush.bf16.msra.mxu0 0
    %588 = vmatpush.bf16.msra.mxu0 0
    %589 = vmatpush.bf16.msra.mxu0 0
    %590 = vmatpush.bf16.msra.mxu0 0
    %591 = vmatpush.bf16.msra.mxu0 0
    %592 = vmatpush.bf16.msra.mxu0 %v583
    %593 = vmatmul.bf16.gmra.mxu0 %v580
    %v594 = vpop.f32.mrf.mxu0
    %v595 = vadd.f32 0.0, %v594
    %v596 = vpop.f32.mrf.mxu0
    %597 = vdwg.mxu0
    %v599 = vunpack.c.l.b16 %v388
    %v600 = vpack.c.b16 %v599, %v599
    %601 = vrot.lane.b32.xlu0 %v600, 64
    %v602 = vpop.permute.xlu0 %601
    %v604 = vsel %vm428, %v573, 0
    %v607 = vsel %vm456, %v602, 0
    %609 = vmatpush.bf16.msra.mxu0 0
    %610 = vmatpush.bf16.msra.mxu0 0
    %611 = vmatpush.bf16.msra.mxu0 0
    %612 = vmatpush.bf16.msra.mxu0 0
    %613 = vmatpush.bf16.msra.mxu0 0
    %614 = vmatpush.bf16.msra.mxu0 0
    %615 = vmatpush.bf16.msra.mxu0 0
    %616 = vmatpush.bf16.msra.mxu0 %v607
    %617 = vmatmul.bf16.gmra.mxu0 %v604
    %v618 = vpop.f32.mrf.mxu0
    %v619 = vadd.f32 0.0, %v618
    %v620 = vpop.f32.mrf.mxu0
    %621 = vdwg.mxu0
    %v622 = vrot.slane %v383, 4
    %v623 = vrot.slane %v385, 4
    %v625 = vsel %vm389, %v622, 0
    %v628 = vsel %vm389, %v623, 0
    %630 = vmatpush.bf16.xpose.msra.mxu0 0
    %631 = vmatpush.bf16.xpose.msra.mxu0 0
    %632 = vmatpush.bf16.xpose.msra.mxu0 0
    %633 = vmatpush.bf16.xpose.msra.mxu0 0
    %634 = vmatpush.bf16.xpose.msra.mxu0 0
    %635 = vmatpush.bf16.xpose.msra.mxu0 0
    %636 = vmatpush.bf16.xpose.msra.mxu0 0
    %637 = vmatpush.bf16.xpose.msra.mxu0 %v628
    %638 = vmatmul.bf16.gmra.mxu0 %v625
    %v639 = vpop.f32.mrf.mxu0
    %v640 = vadd.f32 0.0, %v639
    %v641 = vpop.f32.mrf.mxu0
    %642 = vdwg.mxu0
    %v643 = vrot.slane %v384, 4
    %v644 = vrot.slane %v386, 4
    %v646 = vsel %vm389, %v643, 0
    %v649 = vsel %vm389, %v644, 0
    %651 = vmatpush.bf16.xpose.msra.mxu0 0
    %652 = vmatpush.bf16.xpose.msra.mxu0 0
    %653 = vmatpush.bf16.xpose.msra.mxu0 0
    %654 = vmatpush.bf16.xpose.msra.mxu0 0
    %655 = vmatpush.bf16.xpose.msra.mxu0 0
    %656 = vmatpush.bf16.xpose.msra.mxu0 0
    %657 = vmatpush.bf16.xpose.msra.mxu0 0
    %658 = vmatpush.bf16.xpose.msra.mxu0 %v649
    %659 = vmatmul.bf16.gmra.mxu0 %v646
    %v660 = vpop.f32.mrf.mxu0
    %v661 = vadd.f32 0.0, %v660
    %v662 = vpop.f32.mrf.mxu0
    %663 = vdwg.mxu0
    %v664 = vsel %vm428, %v640, -inf
    %665 = vmax.xlane.f32.xlu0 %v664
    %v666 = vpop.xlane.xlu0 %665
    %v667 = vsel %vm428, %v661, -inf
    %668 = vmax.xlane.f32.xlu0 %v667
    %v669 = vpop.xlane.xlu0 %668
    %v670 = vsub.f32 %v640, %v666
    %v671 = vsub.f32 %v661, %v669
    %v672 = vmul.f32 %v670, 1.442695
    %v673 = vpow.pop %v672
    %v674 = vmul.f32 %v671, 1.442695
    %v675 = vpow.pop %v674
    %v676 = vsel %vm428, %v673, 0.0
    %677 = vadd.xlane.f32.xlu0 %v676
    %v678 = vpop.xlane.xlu0 %677
    %v679 = vsel %vm428, %v675, 0.0
    %680 = vadd.xlane.f32.xlu0 %v679
    %v681 = vpop.xlane.xlu0 %680
    %v682 = vrcp.pop %v678
    %v683 = vrcp.pop %v681
    %v684 = vmul.f32 %v673, %v682
    %v685 = vmul.f32 %v675, %v683
    %v686 = vpack.c.bf16 %v684, %v684
    %v687 = vpack.c.bf16 %v685, %v685
    %v688 = vrot.slane %v387, 4
    %v690 = vsel %vm428, %v686, 0
    %v693 = vsel %vm456, %v688, 0
    %695 = vmatpush.bf16.msra.mxu0 0
    %696 = vmatpush.bf16.msra.mxu0 0
    %697 = vmatpush.bf16.msra.mxu0 0
    %698 = vmatpush.bf16.msra.mxu0 0
    %699 = vmatpush.bf16.msra.mxu0 0
    %700 = vmatpush.bf16.msra.mxu0 0
    %701 = vmatpush.bf16.msra.mxu0 0
    %702 = vmatpush.bf16.msra.mxu0 %v693
    %703 = vmatmul.bf16.gmra.mxu0 %v690
    %v704 = vpop.f32.mrf.mxu0
    %v705 = vadd.f32 0.0, %v704
    %v706 = vpop.f32.mrf.mxu0
    %707 = vdwg.mxu0
    %v708 = vrot.slane %v388, 4
    %v710 = vsel %vm428, %v687, 0
    %v713 = vsel %vm456, %v708, 0
    %715 = vmatpush.bf16.msra.mxu0 0
    %716 = vmatpush.bf16.msra.mxu0 0
    %717 = vmatpush.bf16.msra.mxu0 0
    %718 = vmatpush.bf16.msra.mxu0 0
    %719 = vmatpush.bf16.msra.mxu0 0
    %720 = vmatpush.bf16.msra.mxu0 0
    %721 = vmatpush.bf16.msra.mxu0 0
    %722 = vmatpush.bf16.msra.mxu0 %v713
    %723 = vmatmul.bf16.gmra.mxu0 %v710
    %v724 = vpop.f32.mrf.mxu0
    %v725 = vadd.f32 0.0, %v724
    %v726 = vpop.f32.mrf.mxu0
    %727 = vdwg.mxu0
    %728 = vrot.lane.b32.xlu0 %v383, 64
    %v729 = vpop.permute.xlu0 %728
    %v730 = vrot.slane %v729, 4
    %731 = vrot.lane.b32.xlu0 %v385, 64
    %v732 = vpop.permute.xlu0 %731
    %v733 = vrot.slane %v732, 4
    %v735 = vsel %vm389, %v730, 0
    %v738 = vsel %vm389, %v733, 0
    %740 = vmatpush.bf16.xpose.msra.mxu0 0
    %741 = vmatpush.bf16.xpose.msra.mxu0 0
    %742 = vmatpush.bf16.xpose.msra.mxu0 0
    %743 = vmatpush.bf16.xpose.msra.mxu0 0
    %744 = vmatpush.bf16.xpose.msra.mxu0 0
    %745 = vmatpush.bf16.xpose.msra.mxu0 0
    %746 = vmatpush.bf16.xpose.msra.mxu0 0
    %747 = vmatpush.bf16.xpose.msra.mxu0 %v738
    %748 = vmatmul.bf16.gmra.mxu0 %v735
    %v749 = vpop.f32.mrf.mxu0
    %v750 = vadd.f32 0.0, %v749
    %v751 = vpop.f32.mrf.mxu0
    %752 = vdwg.mxu0
    %753 = vrot.lane.b32.xlu0 %v384, 64
    %v754 = vpop.permute.xlu0 %753
    %v755 = vrot.slane %v754, 4
    %756 = vrot.lane.b32.xlu0 %v386, 64
    %v757 = vpop.permute.xlu0 %756
    %v758 = vrot.slane %v757, 4
    %v760 = vsel %vm389, %v755, 0
    %v763 = vsel %vm389, %v758, 0
    %765 = vmatpush.bf16.xpose.msra.mxu0 0
    %766 = vmatpush.bf16.xpose.msra.mxu0 0
    %767 = vmatpush.bf16.xpose.msra.mxu0 0
    %768 = vmatpush.bf16.xpose.msra.mxu0 0
    %769 = vmatpush.bf16.xpose.msra.mxu0 0
    %770 = vmatpush.bf16.xpose.msra.mxu0 0
    %771 = vmatpush.bf16.xpose.msra.mxu0 0
    %772 = vmatpush.bf16.xpose.msra.mxu0 %v763
    %773 = vmatmul.bf16.gmra.mxu0 %v760
    %v774 = vpop.f32.mrf.mxu0
    %v775 = vadd.f32 0.0, %v774
    %v776 = vpop.f32.mrf.mxu0
    %777 = vdwg.mxu0
    %v778 = vsel %vm428, %v750, -inf
    %779 = vmax.xlane.f32.xlu0 %v778
    %v780 = vpop.xlane.xlu0 %779
    %v781 = vsel %vm428, %v775, -inf
    %782 = vmax.xlane.f32.xlu0 %v781
    %v783 = vpop.xlane.xlu0 %782
    %v784 = vsub.f32 %v750, %v780
    %v785 = vsub.f32 %v775, %v783
    %v786 = vmul.f32 %v784, 1.442695
    %v787 = vpow.pop %v786
    %v788 = vmul.f32 %v785, 1.442695
    %v789 = vpow.pop %v788
    %v790 = vsel %vm428, %v787, 0.0
    %791 = vadd.xlane.f32.xlu0 %v790
    %v792 = vpop.xlane.xlu0 %791
    %v793 = vsel %vm428, %v789, 0.0
    %794 = vadd.xlane.f32.xlu0 %v793
    %v795 = vpop.xlane.xlu0 %794
    %v796 = vrcp.pop %v792
    %v797 = vrcp.pop %v795
    %v798 = vmul.f32 %v787, %v796
    %v799 = vmul.f32 %v789, %v797
    %v800 = vpack.c.bf16 %v798, %v798
    %v801 = vpack.c.bf16 %v799, %v799
    %802 = vrot.lane.b32.xlu0 %v387, 64
    %v803 = vpop.permute.xlu0 %802
    %v804 = vrot.slane %v803, 4
    %v806 = vsel %vm428, %v800, 0
    %v809 = vsel %vm456, %v804, 0
    %811 = vmatpush.bf16.msra.mxu0 0
    %812 = vmatpush.bf16.msra.mxu0 0
    %813 = vmatpush.bf16.msra.mxu0 0
    %814 = vmatpush.bf16.msra.mxu0 0
    %815 = vmatpush.bf16.msra.mxu0 0
    %816 = vmatpush.bf16.msra.mxu0 0
    %817 = vmatpush.bf16.msra.mxu0 0
    %818 = vmatpush.bf16.msra.mxu0 %v809
    %819 = vmatmul.bf16.gmra.mxu0 %v806
    %v820 = vpop.f32.mrf.mxu0
    %v821 = vadd.f32 0.0, %v820
    %v822 = vpop.f32.mrf.mxu0
    %823 = vdwg.mxu0
    %824 = vrot.lane.b32.xlu0 %v388, 64
    %v825 = vpop.permute.xlu0 %824
    %v826 = vrot.slane %v825, 4
    %v828 = vsel %vm428, %v801, 0
    %v831 = vsel %vm456, %v826, 0
    %833 = vmatpush.bf16.msra.mxu0 0
    %834 = vmatpush.bf16.msra.mxu0 0
    %835 = vmatpush.bf16.msra.mxu0 0
    %836 = vmatpush.bf16.msra.mxu0 0
    %837 = vmatpush.bf16.msra.mxu0 0
    %838 = vmatpush.bf16.msra.mxu0 0
    %839 = vmatpush.bf16.msra.mxu0 0
    %840 = vmatpush.bf16.msra.mxu0 %v831
    %841 = vmatmul.bf16.gmra.mxu0 %v828
    %v842 = vpop.f32.mrf.mxu0
    %v843 = vadd.f32 0.0, %v842
    %v844 = vpop.f32.mrf.mxu0
    %845 = vdwg.mxu0
    %848 = vrot.lane.b32.xlu0 %v595, 64
    %v849 = vpop.permute.xlu0 %848
    %850 = vrot.lane.b32.xlu0 %v619, 64
    %v851 = vpop.permute.xlu0 %850
    %856 = vrot.lane.b32.xlu0 %v821, 64
    %v857 = vpop.permute.xlu0 %856
    %858 = vrot.lane.b32.xlu0 %v843, 64
    %v859 = vpop.permute.xlu0 %858
    %v862 = vsel %vm389, %v470, %v849
    %v863 = vsel %vm389, %v489, %v851
    %v864 = vsel %vm389, %v705, %v857
    %v865 = vsel %vm389, %v725, %v859
    %v866 = vpack.c.bf16 %v863, %v862
    %v867 = vpack.c.bf16 %v865, %v864
    %v868 = vld [vmem:[#allocation5] sm:$0xff]
    %v869 = vld [vmem:[#allocation5 + $0x8] sm:$0xff]
    %v870 = vld [vmem:[#allocation5 + $0x10] sm:$0xff]
    %v871 = vld [vmem:[#allocation5 + $0x18] sm:$0xff]
    %v872 = vld [vmem:[#allocation5 + $0x20] sm:$0xff]
    %v873 = vld [vmem:[#allocation5 + $0x28] sm:$0xff]
    %v874 = vld [vmem:[#allocation5 + $0x30] sm:$0xff]
    %v875 = vld [vmem:[#allocation5 + $0x38] sm:$0xff]
    %v876 = vld [vmem:[#allocation5 + $0x40] sm:$0xff]
    %v877 = vld [vmem:[#allocation5 + $0x48] sm:$0xff]
    %v878 = vld [vmem:[#allocation5 + $0x50] sm:$0xff]
    %v879 = vld [vmem:[#allocation5 + $0x58] sm:$0xff]
    %v880 = vld [vmem:[#allocation5 + $0x60] sm:$0xff]
    %v881 = vld [vmem:[#allocation5 + $0x68] sm:$0xff]
    %v882 = vld [vmem:[#allocation5 + $0x70] sm:$0xff]
    %v883 = vld [vmem:[#allocation5 + $0x78] sm:$0xff]
    %v884 = vld [vmem:[#allocation5 + $0x80] sm:$0xff]
    %v885 = vld [vmem:[#allocation5 + $0x88] sm:$0xff]
    %v886 = vld [vmem:[#allocation5 + $0x90] sm:$0xff]
    %v887 = vld [vmem:[#allocation5 + $0x98] sm:$0xff]
    %v888 = vld [vmem:[#allocation5 + $0xa0] sm:$0xff]
    %v889 = vld [vmem:[#allocation5 + $0xa8] sm:$0xff]
    %v890 = vld [vmem:[#allocation5 + $0xb0] sm:$0xff]
    %v891 = vld [vmem:[#allocation5 + $0xb8] sm:$0xff]
    %v892 = vld [vmem:[#allocation5 + $0xc0] sm:$0xff]
    %v893 = vld [vmem:[#allocation5 + $0xc8] sm:$0xff]
    %v894 = vld [vmem:[#allocation5 + $0xd0] sm:$0xff]
    %v895 = vld [vmem:[#allocation5 + $0xd8] sm:$0xff]
    %v896 = vld [vmem:[#allocation5 + $0xe0] sm:$0xff]
    %v897 = vld [vmem:[#allocation5 + $0xe8] sm:$0xff]
    %v898 = vld [vmem:[#allocation5 + $0xf0] sm:$0xff]
    %v899 = vld [vmem:[#allocation5 + $0xf8] sm:$0xff]
    %v900 = vld [vmem:[#allocation7] sm:$0x3]
    %v902 = vperm.slane %v900, 0
    %v903 = vperm.slane %v900, 1
    %v938 = vunpack.c.l.b16 %v868
    %v939 = vunpack.c.h.b16 %v868
    %v940 = vunpack.c.l.b16 %v869
    %v941 = vunpack.c.h.b16 %v869
    %v942 = vunpack.c.l.b16 %v870
    %v943 = vunpack.c.h.b16 %v870
    %v944 = vunpack.c.l.b16 %v871
    %v945 = vunpack.c.h.b16 %v871
    %v946 = vunpack.c.l.b16 %v872
    %v947 = vunpack.c.h.b16 %v872
    %v948 = vunpack.c.l.b16 %v873
    %v949 = vunpack.c.h.b16 %v873
    %v950 = vunpack.c.l.b16 %v874
    %v951 = vunpack.c.h.b16 %v874
    %v952 = vunpack.c.l.b16 %v875
    %v953 = vunpack.c.h.b16 %v875
    %v954 = vunpack.c.l.b16 %v876
    %v955 = vunpack.c.h.b16 %v876
    %v956 = vunpack.c.l.b16 %v877
    %v957 = vunpack.c.h.b16 %v877
    %v958 = vunpack.c.l.b16 %v878
    %v959 = vunpack.c.h.b16 %v878
    %v960 = vunpack.c.l.b16 %v879
    %v961 = vunpack.c.h.b16 %v879
    %v962 = vunpack.c.l.b16 %v880
    %v963 = vunpack.c.h.b16 %v880
    %v964 = vunpack.c.l.b16 %v881
    %v965 = vunpack.c.h.b16 %v881
    %v966 = vunpack.c.l.b16 %v882
    %v967 = vunpack.c.h.b16 %v882
    %v968 = vunpack.c.l.b16 %v883
    %v969 = vunpack.c.h.b16 %v883
    %v970 = vunpack.c.l.b16 %v884
    %v971 = vunpack.c.h.b16 %v884
    %v972 = vunpack.c.l.b16 %v885
    %v973 = vunpack.c.h.b16 %v885
    %v974 = vunpack.c.l.b16 %v886
    %v975 = vunpack.c.h.b16 %v886
    %v976 = vunpack.c.l.b16 %v887
    %v977 = vunpack.c.h.b16 %v887
    %v978 = vunpack.c.l.b16 %v888
    %v979 = vunpack.c.h.b16 %v888
    %v980 = vunpack.c.l.b16 %v889
    %v981 = vunpack.c.h.b16 %v889
    %v982 = vunpack.c.l.b16 %v890
    %v983 = vunpack.c.h.b16 %v890
    %v984 = vunpack.c.l.b16 %v891
    %v985 = vunpack.c.h.b16 %v891
    %v986 = vunpack.c.l.b16 %v892
    %v987 = vunpack.c.h.b16 %v892
    %v988 = vunpack.c.l.b16 %v893
    %v989 = vunpack.c.h.b16 %v893
    %v990 = vunpack.c.l.b16 %v894
    %v991 = vunpack.c.h.b16 %v894
    %v992 = vunpack.c.l.b16 %v895
    %v993 = vunpack.c.h.b16 %v895
    %v994 = vunpack.c.l.b16 %v896
    %v995 = vunpack.c.h.b16 %v896
    %v996 = vunpack.c.l.b16 %v897
    %v997 = vunpack.c.h.b16 %v897
    %v998 = vunpack.c.l.b16 %v898
    %v999 = vunpack.c.h.b16 %v898
    %v1000 = vunpack.c.l.b16 %v899
    %v1001 = vunpack.c.h.b16 %v899
    %v1002 = vpack.c.b16 %v940, %v938
    %v1003 = vpack.c.b16 %v941, %v939
    %v1004 = vpack.c.b16 %v944, %v942
    %v1005 = vpack.c.b16 %v945, %v943
    %v1006 = vpack.c.b16 %v948, %v946
    %v1007 = vpack.c.b16 %v949, %v947
    %v1008 = vpack.c.b16 %v952, %v950
    %v1009 = vpack.c.b16 %v953, %v951
    %v1010 = vpack.c.b16 %v956, %v954
    %v1011 = vpack.c.b16 %v957, %v955
    %v1012 = vpack.c.b16 %v960, %v958
    %v1013 = vpack.c.b16 %v961, %v959
    %v1014 = vpack.c.b16 %v964, %v962
    %v1015 = vpack.c.b16 %v965, %v963
    %v1016 = vpack.c.b16 %v968, %v966
    %v1017 = vpack.c.b16 %v969, %v967
    %v1018 = vpack.c.b16 %v972, %v970
    %v1019 = vpack.c.b16 %v973, %v971
    %v1020 = vpack.c.b16 %v976, %v974
    %v1021 = vpack.c.b16 %v977, %v975
    %v1022 = vpack.c.b16 %v980, %v978
    %v1023 = vpack.c.b16 %v981, %v979
    %v1024 = vpack.c.b16 %v984, %v982
    %v1025 = vpack.c.b16 %v985, %v983
    %v1026 = vpack.c.b16 %v988, %v986
    %v1027 = vpack.c.b16 %v989, %v987
    %v1028 = vpack.c.b16 %v992, %v990
    %v1029 = vpack.c.b16 %v993, %v991
    %v1030 = vpack.c.b16 %v996, %v994
    %v1031 = vpack.c.b16 %v997, %v995
    %v1032 = vpack.c.b16 %v1000, %v998
    %v1033 = vpack.c.b16 %v1001, %v999
    %1066 = vmatpush.bf16.msra.mxu0 %v1016
    %1067 = vmatpush.bf16.msra.mxu0 %v1014
    %1068 = vmatpush.bf16.msra.mxu0 %v1012
    %1069 = vmatpush.bf16.msra.mxu0 %v1010
    %1070 = vmatpush.bf16.msra.mxu0 %v1008
    %1071 = vmatpush.bf16.msra.mxu0 %v1006
    %1072 = vmatpush.bf16.msra.mxu0 %v1004
    %1073 = vmatpush.bf16.msra.mxu0 %v1002
    %1074 = vmatmul.bf16.gmra.mxu0 %v866
    %v1075 = vpop.f32.mrf.mxu0
    %v1076 = vadd.f32 %v902, %v1075
    %v1077 = vpop.f32.mrf.mxu0
    %v1078 = vadd.f32 %v902, %v1077
    %1079 = vdwg.mxu0
    %1080 = vmatpush.bf16.msra.mxu0 %v1032
    %1081 = vmatpush.bf16.msra.mxu0 %v1030
    %1082 = vmatpush.bf16.msra.mxu0 %v1028
    %1083 = vmatpush.bf16.msra.mxu0 %v1026
    %1084 = vmatpush.bf16.msra.mxu0 %v1024
    %1085 = vmatpush.bf16.msra.mxu0 %v1022
    %1086 = vmatpush.bf16.msra.mxu0 %v1020
    %1087 = vmatpush.bf16.msra.mxu0 %v1018
    %1088 = vmatmul.bf16.gmra.mxu0 %v867
    %v1089 = vpop.f32.mrf.mxu0
    %v1090 = vadd.f32 %v1076, %v1089
    %v1091 = vpop.f32.mrf.mxu0
    %v1092 = vadd.f32 %v1078, %v1091
    %1093 = vdwg.mxu0
    %1094 = vmatpush.bf16.msra.mxu0 %v1017
    %1095 = vmatpush.bf16.msra.mxu0 %v1015
    %1096 = vmatpush.bf16.msra.mxu0 %v1013
    %1097 = vmatpush.bf16.msra.mxu0 %v1011
    %1098 = vmatpush.bf16.msra.mxu0 %v1009
    %1099 = vmatpush.bf16.msra.mxu0 %v1007
    %1100 = vmatpush.bf16.msra.mxu0 %v1005
    %1101 = vmatpush.bf16.msra.mxu0 %v1003
    %1102 = vmatmul.bf16.gmra.mxu0 %v866
    %v1103 = vpop.f32.mrf.mxu0
    %v1104 = vadd.f32 %v903, %v1103
    %v1105 = vpop.f32.mrf.mxu0
    %v1106 = vadd.f32 %v903, %v1105
    %1107 = vdwg.mxu0
    %1108 = vmatpush.bf16.msra.mxu0 %v1033
    %1109 = vmatpush.bf16.msra.mxu0 %v1031
    %1110 = vmatpush.bf16.msra.mxu0 %v1029
    %1111 = vmatpush.bf16.msra.mxu0 %v1027
    %1112 = vmatpush.bf16.msra.mxu0 %v1025
    %1113 = vmatpush.bf16.msra.mxu0 %v1023
    %1114 = vmatpush.bf16.msra.mxu0 %v1021
    %1115 = vmatpush.bf16.msra.mxu0 %v1019
    %1116 = vmatmul.bf16.gmra.mxu0 %v867
    %v1117 = vpop.f32.mrf.mxu0
    %v1118 = vadd.f32 %v1104, %v1117
    %v1119 = vpop.f32.mrf.mxu0
    %v1120 = vadd.f32 %v1106, %v1119
    %1121 = vdwg.mxu0
    %v1122 = vpack.c.bf16 %v1092, %v1090
    %v1123 = vpack.c.bf16 %v1120, %v1118
    %v1124 = vld [vmem:[%s11] sm:$0xf]
    %v1125 = vld [vmem:[%s11 + $0x4] sm:$0xf]
    %v1126 = vld [vmem:[%s11 + $0x8] sm:$0xf]
    %v1127 = vld [vmem:[%s11 + $0xc] sm:$0xf]
    %v1128 = vld [vmem:[%s11 + $0x10] sm:$0xf]
    %v1129 = vld [vmem:[%s11 + $0x14] sm:$0xf]
    %v1130 = vld [vmem:[%s11 + $0x18] sm:$0xf]
    %v1131 = vld [vmem:[%s11 + $0x1c] sm:$0xf]
    %v1132 = vld [vmem:[%s11 + $0x20] sm:$0xf]
    %v1133 = vld [vmem:[%s11 + $0x24] sm:$0xf]
    %v1134 = vld [vmem:[%s11 + $0x28] sm:$0xf]
    %v1135 = vld [vmem:[%s11 + $0x2c] sm:$0xf]
    %v1136 = vld [vmem:[%s11 + $0x30] sm:$0xf]
    %v1137 = vld [vmem:[%s11 + $0x34] sm:$0xf]
    %v1138 = vld [vmem:[%s11 + $0x38] sm:$0xf]
    %v1139 = vld [vmem:[%s11 + $0x3c] sm:$0xf]
    %v1140 = vld [vmem:[%s11 + $0x40] sm:$0xf]
    %v1141 = vld [vmem:[%s11 + $0x44] sm:$0xf]
    %v1142 = vld [vmem:[%s11 + $0x48] sm:$0xf]
    %v1143 = vld [vmem:[%s11 + $0x4c] sm:$0xf]
    %v1144 = vld [vmem:[%s11 + $0x50] sm:$0xf]
    %v1145 = vld [vmem:[%s11 + $0x54] sm:$0xf]
    %v1146 = vld [vmem:[%s11 + $0x58] sm:$0xf]
    %v1147 = vld [vmem:[%s11 + $0x5c] sm:$0xf]
    %v1148 = vld [vmem:[%s11 + $0x60] sm:$0xf]
    %v1149 = vld [vmem:[%s11 + $0x64] sm:$0xf]
    %v1150 = vld [vmem:[%s11 + $0x68] sm:$0xf]
    %v1151 = vld [vmem:[%s11 + $0x6c] sm:$0xf]
    %v1152 = vld [vmem:[%s11 + $0x70] sm:$0xf]
    %v1153 = vld [vmem:[%s11 + $0x74] sm:$0xf]
    %v1154 = vld [vmem:[%s11 + $0x78] sm:$0xf]
    %v1155 = vld [vmem:[%s11 + $0x7c] sm:$0xf]
    %v1156 = vld [vmem:[%s12] sm:$0x1]
    %v1158 = vperm.slane %v1156, 0
    %v1192 = vunpack.c.l.b16 %v1124
    %v1193 = vunpack.c.l.b16 %v1125
    %v1194 = vunpack.c.l.b16 %v1126
    %v1195 = vunpack.c.l.b16 %v1127
    %v1196 = vunpack.c.l.b16 %v1128
    %v1197 = vunpack.c.l.b16 %v1129
    %v1198 = vunpack.c.l.b16 %v1130
    %v1199 = vunpack.c.l.b16 %v1131
    %v1200 = vunpack.c.l.b16 %v1132
    %v1201 = vunpack.c.l.b16 %v1133
    %v1202 = vunpack.c.l.b16 %v1134
    %v1203 = vunpack.c.l.b16 %v1135
    %v1204 = vunpack.c.l.b16 %v1136
    %v1205 = vunpack.c.l.b16 %v1137
    %v1206 = vunpack.c.l.b16 %v1138
    %v1207 = vunpack.c.l.b16 %v1139
    %v1208 = vunpack.c.l.b16 %v1140
    %v1209 = vunpack.c.l.b16 %v1141
    %v1210 = vunpack.c.l.b16 %v1142
    %v1211 = vunpack.c.l.b16 %v1143
    %v1212 = vunpack.c.l.b16 %v1144
    %v1213 = vunpack.c.l.b16 %v1145
    %v1214 = vunpack.c.l.b16 %v1146
    %v1215 = vunpack.c.l.b16 %v1147
    %v1216 = vunpack.c.l.b16 %v1148
    %v1217 = vunpack.c.l.b16 %v1149
    %v1218 = vunpack.c.l.b16 %v1150
    %v1219 = vunpack.c.l.b16 %v1151
    %v1220 = vunpack.c.l.b16 %v1152
    %v1221 = vunpack.c.l.b16 %v1153
    %v1222 = vunpack.c.l.b16 %v1154
    %v1223 = vunpack.c.l.b16 %v1155
    %v1224 = vpack.c.b16 %v1193, %v1192
    %v1225 = vpack.c.b16 %v1195, %v1194
    %v1226 = vpack.c.b16 %v1197, %v1196
    %v1227 = vpack.c.b16 %v1199, %v1198
    %v1228 = vpack.c.b16 %v1201, %v1200
    %v1229 = vpack.c.b16 %v1203, %v1202
    %v1230 = vpack.c.b16 %v1205, %v1204
    %v1231 = vpack.c.b16 %v1207, %v1206
    %v1232 = vpack.c.b16 %v1209, %v1208
    %v1233 = vpack.c.b16 %v1211, %v1210
    %v1234 = vpack.c.b16 %v1213, %v1212
    %v1235 = vpack.c.b16 %v1215, %v1214
    %v1236 = vpack.c.b16 %v1217, %v1216
    %v1237 = vpack.c.b16 %v1219, %v1218
    %v1238 = vpack.c.b16 %v1221, %v1220
    %v1239 = vpack.c.b16 %v1223, %v1222
    %1256 = vmatpush.bf16.msra.mxu0 %v1231
    %1257 = vmatpush.bf16.msra.mxu0 %v1230
    %1258 = vmatpush.bf16.msra.mxu0 %v1229
    %1259 = vmatpush.bf16.msra.mxu0 %v1228
    %1260 = vmatpush.bf16.msra.mxu0 %v1227
    %1261 = vmatpush.bf16.msra.mxu0 %v1226
    %1262 = vmatpush.bf16.msra.mxu0 %v1225
    %1263 = vmatpush.bf16.msra.mxu0 %v1224
    %1264 = vmatmul.bf16.gmra.mxu0 %v1122
    %v1265 = vpop.f32.mrf.mxu0
    %v1266 = vadd.f32 %v1158, %v1265
    %v1267 = vpop.f32.mrf.mxu0
    %v1268 = vadd.f32 %v1158, %v1267
    %1269 = vdwg.mxu0
    %1270 = vmatpush.bf16.msra.mxu0 %v1239
    %1271 = vmatpush.bf16.msra.mxu0 %v1238
    %1272 = vmatpush.bf16.msra.mxu0 %v1237
    %1273 = vmatpush.bf16.msra.mxu0 %v1236
    %1274 = vmatpush.bf16.msra.mxu0 %v1235
    %1275 = vmatpush.bf16.msra.mxu0 %v1234
    %1276 = vmatpush.bf16.msra.mxu0 %v1233
    %1277 = vmatpush.bf16.msra.mxu0 %v1232
    %1278 = vmatmul.bf16.gmra.mxu0 %v1123
    %v1279 = vpop.f32.mrf.mxu0
    %v1280 = vadd.f32 %v1266, %v1279
    %v1281 = vpop.f32.mrf.mxu0
    %v1282 = vadd.f32 %v1268, %v1281
    %1283 = vdwg.mxu0
    %v1284 = vadd.f32 %v1280, %v165
    %v1285 = vadd.f32 %v1282, %v166
    %v1286 = vmax.f32 %v1284, 0.0
    %v1287 = vmax.f32 %v1285, 0.0
    %v1288 = vld [vmem:[%s13] sm:$0x1]
    %v1289 = vld [vmem:[#allocation8] sm:$0x1]
    %v1290 = vsel %vm204, %v1286, 0.0
    %1291 = vadd.xlane.f32.xlu0 %v1290
    %v1292 = vpop.xlane.xlu0 %1291
    %v1293 = vsel %vm204, %v1287, 0.0
    %1294 = vadd.xlane.f32.xlu0 %v1293
    %v1295 = vpop.xlane.xlu0 %1294
    %v1296 = vrcp.pop 32.0
    %v1297 = vmul.f32 32.0, %v1296
    %v1298 = vsub.f32 1.0, %v1297
    %v1299 = vmul.f32 %v1296, %v1298
    %v1300 = vadd.f32 %v1296, %v1299
    %vm1301 = vweird.f32 %v1296
    %v1302 = vsel %vm1301, %v1296, %v1300
    %v1303 = vmul.f32 %v1292, %v1302
    %v1304 = vmul.f32 %v1295, %v1302
    %v1305 = vsub.f32 %v1286, %v1303
    %v1306 = vsub.f32 %v1287, %v1304
    %v1307 = vmul.f32 %v1305, %v1305
    %v1308 = vmul.f32 %v1306, %v1306
    %v1309 = vsel %vm204, %v1307, 0.0
    %1310 = vadd.xlane.f32.xlu0 %v1309
    %v1311 = vpop.xlane.xlu0 %1310
    %v1312 = vsel %vm204, %v1308, 0.0
    %1313 = vadd.xlane.f32.xlu0 %v1312
    %v1314 = vpop.xlane.xlu0 %1313
    %v1315 = vmul.f32 %v1311, %v1302
    %v1316 = vmul.f32 %v1314, %v1302
    %v1317 = vadd.f32 %v1315, 1e-06
    %v1318 = vadd.f32 %v1316, 1e-06
    %v1319 = vrsqrt.pop %v1317
    %v1320 = vmul.f32 %v1319, %v1317
    %v1321 = vmul.f32 %v1320, %v1319
    %v1322 = vmul.f32 0.5, %v1321
    %v1323 = vsub.f32 1.5, %v1322
    %v1324 = vmul.f32 %v1319, %v1323
    %vm1325 = vweird.f32 %v1317
    %vm1326 = vweird.f32 %v1319
    %vm1327 = vmor %vm1325, %vm1326
    %v1328 = vsel %vm1327, %v1319, %v1324
    %v1329 = vrsqrt.pop %v1318
    %v1330 = vmul.f32 %v1329, %v1318
    %v1331 = vmul.f32 %v1330, %v1329
    %v1332 = vmul.f32 0.5, %v1331
    %v1333 = vsub.f32 1.5, %v1332
    %v1334 = vmul.f32 %v1329, %v1333
    %vm1335 = vweird.f32 %v1318
    %vm1336 = vweird.f32 %v1329
    %vm1337 = vmor %vm1335, %vm1336
    %v1338 = vsel %vm1337, %v1329, %v1334
    %v1339 = vmul.f32 %v1305, %v1328
    %v1340 = vmul.f32 %v1306, %v1338
    %v1342 = vperm.slane %v1288, 0
    %v1344 = vmul.f32 %v1339, %v1342
    %v1345 = vmul.f32 %v1340, %v1342
    %v1347 = vperm.slane %v1289, 0
    %v1349 = vadd.f32 %v1344, %v1347
    %v1350 = vadd.f32 %v1345, %v1347
    %v1351 = vpack.c.bf16 %v1350, %v1349
    %v1352 = vld [vmem:[#allocation10] sm:$0xf]
    %v1353 = vld [vmem:[#allocation10 + $0x4] sm:$0xf]
    %v1354 = vld [vmem:[#allocation10 + $0x8] sm:$0xf]
    %v1355 = vld [vmem:[#allocation10 + $0xc] sm:$0xf]
    %v1356 = vld [vmem:[#allocation11] sm:$0x1]
    %v1358 = vperm.slane %v1356, 0
    %v1364 = vunpack.c.l.b16 %v1352
    %v1365 = vunpack.c.l.b16 %v1353
    %v1366 = vunpack.c.l.b16 %v1354
    %v1367 = vunpack.c.l.b16 %v1355
    %v1368 = vpack.c.b16 %v1365, %v1364
    %v1369 = vpack.c.b16 %v1367, %v1366
    %v1373 = vsel %vm204, %v1351, 0
    %1375 = vmatpush.bf16.msra.mxu0 0
    %1376 = vmatpush.bf16.msra.mxu0 0
    %1377 = vmatpush.bf16.msra.mxu0 0
    %1378 = vmatpush.bf16.msra.mxu0 0
    %1379 = vmatpush.bf16.msra.mxu0 0
    %1380 = vmatpush.bf16.msra.mxu0 0
    %1381 = vmatpush.bf16.msra.mxu0 %v1369
    %1382 = vmatpush.bf16.msra.mxu0 %v1368
    %1383 = vmatmul.bf16.gmra.mxu0 %v1373
    %v1384 = vpop.f32.mrf.mxu0
    %v1385 = vadd.f32 %v1358, %v1384
    %v1386 = vpop.f32.mrf.mxu0
    %v1387 = vadd.f32 %v1358, %v1386
    %1388 = vdwg.mxu0
    %v1389 = vadd.f32 %v1385, %v1349
    %v1390 = vadd.f32 %v1387, %v1350
    %v1391 = vmax.f32 %v1389, 0.0
    %v1392 = vmax.f32 %v1390, 0.0
    %v1393 = vld [vmem:[%s17] sm:$0x1]
    %v1394 = vld [vmem:[#allocation13] sm:$0x1]
    %v1395 = vsel %vm204, %v1391, 0.0
    %1396 = vadd.xlane.f32.xlu0 %v1395
    %v1397 = vpop.xlane.xlu0 %1396
    %v1398 = vsel %vm204, %v1392, 0.0
    %1399 = vadd.xlane.f32.xlu0 %v1398
    %v1400 = vpop.xlane.xlu0 %1399
    %v1401 = vmul.f32 %v1397, %v1302
    %v1402 = vmul.f32 %v1400, %v1302
    %v1403 = vsub.f32 %v1391, %v1401
    %v1404 = vsub.f32 %v1392, %v1402
    %v1405 = vmul.f32 %v1403, %v1403
    %v1406 = vmul.f32 %v1404, %v1404
    %v1407 = vsel %vm204, %v1405, 0.0
    %1408 = vadd.xlane.f32.xlu0 %v1407
    %v1409 = vpop.xlane.xlu0 %1408
    %v1410 = vsel %vm204, %v1406, 0.0
    %1411 = vadd.xlane.f32.xlu0 %v1410
    %v1412 = vpop.xlane.xlu0 %1411
    %v1413 = vmul.f32 %v1409, %v1302
    %v1414 = vmul.f32 %v1412, %v1302
    %v1415 = vadd.f32 %v1413, 1e-06
    %v1416 = vadd.f32 %v1414, 1e-06
    %v1417 = vrsqrt.pop %v1415
    %v1418 = vmul.f32 %v1417, %v1415
    %v1419 = vmul.f32 %v1418, %v1417
    %v1420 = vmul.f32 0.5, %v1419
    %v1421 = vsub.f32 1.5, %v1420
    %v1422 = vmul.f32 %v1417, %v1421
    %vm1423 = vweird.f32 %v1415
    %vm1424 = vweird.f32 %v1417
    %vm1425 = vmor %vm1423, %vm1424
    %v1426 = vsel %vm1425, %v1417, %v1422
    %v1427 = vrsqrt.pop %v1416
    %v1428 = vmul.f32 %v1427, %v1416
    %v1429 = vmul.f32 %v1428, %v1427
    %v1430 = vmul.f32 0.5, %v1429
    %v1431 = vsub.f32 1.5, %v1430
    %v1432 = vmul.f32 %v1427, %v1431
    %vm1433 = vweird.f32 %v1416
    %vm1434 = vweird.f32 %v1427
    %vm1435 = vmor %vm1433, %vm1434
    %v1436 = vsel %vm1435, %v1427, %v1432
    %v1437 = vmul.f32 %v1403, %v1426
    %v1438 = vmul.f32 %v1404, %v1436
    %v1440 = vperm.slane %v1393, 0
    %v1442 = vmul.f32 %v1437, %v1440
    %v1443 = vmul.f32 %v1438, %v1440
    %v1445 = vperm.slane %v1394, 0
    %v1447 = vadd.f32 %v1442, %v1445
    %v1448 = vadd.f32 %v1443, %v1445
    %1449 = vst.msk [vmem:[#allocation14] sm:$0xff] %vm204, %v1447
    %1450 = vst.msk [vmem:[#allocation14 + $0x8] sm:$0xff] %vm204, %v1448
    // Predicated region
    $region106: #{cross_attention_forward.1} parent=1 // pred_check
      _
    $region107: #{cross_attention_forward.1} parent=1 // pred_check_branch
      %1452 = sbr.rel (0) target = $region109
    $region108: #{cross_attention_forward.1} parent=1 // pred_region
      %1454 = vsyncadd [#allocation4], 0
      %s1455 = sshll.u32 [#allocation14], 4
      %s1456 = int_to_ptr.vmem [resolvable:$true] %s1455
      %s1457 = sshll.u32 %s19, 4
      %s1458 = int_to_ptr.hbm [resolvable:$true] %s1457
      %1463 = dma.vmem_to_hbm [thread:$0]  %s1456, 256, %s1458, [#allocation4], 128, 128, 8
    $region109: #{cross_attention_forward.1} parent=1 // pred_fallthru
      _
    // Predicated region
    $region110: #{cross_attention_forward.1} parent=1 // pred_check
      _
    $region111: #{cross_attention_forward.1} parent=1 // pred_check_branch
      %1465 = sbr.rel (0) target = $region113
    $region112: #{cross_attention_forward.1} parent=1 // pred_region
      %1467 = dma.done [#allocation4], 256
    $region113: #{cross_attention_forward.1} parent=1 // pred_fallthru
      _
    %1468 = vsyncpa [#allocation3], 1
    %1469 = vsyncpa [#allocation6], 1
    %1470 = vsyncpa [#allocation9], 1
    %1471 = vsyncpa [#allocation12], 1
    %1472 = vsyncpa [#allocation4], 1

</llo_original>
